<compile_context>
chip_gen: v6e
topology: v6e:2x2x1
jax: 0.10.0
libtpu: 0.0.40
codegen_flags: <defaults>
</compile_context>

<pallas_src>
import numpy as np
import jax
import jax.numpy as jnp
from jax.experimental import pallas as pl
from jax.experimental.pallas import tpu as pltpu


# ----------------------------------------------------------------------------
# torchvision-compatible gaussian kernel
# ----------------------------------------------------------------------------
def _gaussian_kernel1d(kernel_size: int, sigma: float) -> np.ndarray:
    """Matches torchvision.transforms.functional._get_gaussian_kernel1d."""
    half = (kernel_size - 1) * 0.5
    x = np.linspace(-half, half, kernel_size, dtype=np.float64)
    pdf = np.exp(-0.5 * (x / sigma) ** 2)
    return (pdf / pdf.sum()).astype(np.float32)


def _default_sigma(kernel_size: int) -> float:
    """torchvision default when sigma=None."""
    return 0.3 * ((kernel_size - 1) * 0.5 - 1) + 0.8


def _reflect(i: int, n: int) -> int:
    """np/torch 'reflect' (no edge repeat); valid for -n < i < 2n - 1."""
    if i < 0:
        return -i
    if i >= n:
        return 2 * (n - 1) - i
    return i


# ----------------------------------------------------------------------------
# pure-JAX reference (used for testing and as the oversized-plane fallback)
# ----------------------------------------------------------------------------
def _reference_sharpen(img: jax.Array, kernel_size: int) -> jax.Array:
    B, C, H, W = img.shape
    r = kernel_size // 2
    w = _gaussian_kernel1d(kernel_size, _default_sigma(kernel_size))
    x = img.astype(jnp.float32)
    xp = jnp.pad(x, ((0, 0), (0, 0), (r, r), (r, r)), mode="reflect")
    tmp = sum(float(w[j]) * xp[:, :, :, j:j + W] for j in range(kernel_size))
    blur = sum(float(w[i]) * tmp[:, :, i:i + H, :] for i in range(kernel_size))
    return jnp.clip(2.0 * x - blur, 0.0, 1.0).astype(img.dtype)


# ----------------------------------------------------------------------------
# tiling heuristics (generation aware)
# ----------------------------------------------------------------------------
def _vmem_capacity_bytes() -> int:
    try:
        cap = getattr(pltpu.get_tpu_info(), "vmem_capacity_bytes", None)
        if cap:
            return int(cap)
    except Exception:
        pass
    return 64 * 1024 * 1024  # conservative default (v7x per-TC VMEM)


def _block_vmem_bytes(ct, H, W, in_isz, tmp_isz):
    blk = ct * H * W
    # double-buffered input + double-buffered output + horizontal-pass scratch
    return 2 * blk * in_isz + 2 * blk * in_isz + blk * tmp_isz


def _choose_channels_per_block(BC, H, W, in_isz, tmp_isz, budget_bytes):
    # Cap at BC//2 so the "parallel" grid axis has >=2 blocks when BC >= 2.
    cap = max(1, min(16, BC // 2))
    for ct in range(min(cap, BC), 0, -1):
        if BC % ct:
            continue
        # 25% headroom for transient compiler temps / spills.
        if int(_block_vmem_bytes(ct, H, W, in_isz, tmp_isz) * 1.25) <= budget_bytes:
            return ct
    return None


def _choose_row_chunk(ct, H, W, slab_bytes=48 * 1024, max_chunks=32):
    """Rows per in-kernel chunk: keep one (ct, rows, W) f32 slab ~<= 12 vregs
    while bounding the statically-unrolled chunk count (compile time)."""
    if H <= 8:
        return H
    rc = max(8, (slab_bytes // max(1, ct * W * 4)) // 8 * 8)
    rc = max(rc, (-(-H // max_chunks) + 7) // 8 * 8)
    return min(H, rc)


# ----------------------------------------------------------------------------
# Pallas kernel
# ----------------------------------------------------------------------------
def _make_sharpen_kernel(weights, H, W, row_chunk):
    """Separable reflect-padded gaussian blur fused with the sharpen, for one
    (ct, H, W) channel-batched block.  All padding is done in-kernel."""
    k = len(weights)
    r = k // 2
    w_in = W - 2 * r                                   # columns whose taps never reflect
    border_cols = [c for c in range(W) if c < r or c >= W - r]
    border_rows = [y for y in range(H) if y < r or y >= H - r]
    f32 = jnp.float32

    def row_chunks(start, stop):
        out, y0 = [], start
        while y0 < stop:
            out.append((y0, min(row_chunk, stop - y0)))
            y0 += row_chunk
        return out

    def kernel(x_ref, o_ref, tmp_ref):
        # x_ref / o_ref : (ct, H, W) original-dtype image block
        # tmp_ref       : (ct, H, W) VMEM scratch holding the horizontal pass

        # ---- Phase 1: horizontal reflect-padded gaussian -> tmp_ref ---------
        for y0, rows in row_chunks(0, H):
            ys = slice(y0, y0 + rows)
            if w_in > 0:
                # Per-tap slices read straight from the ref (no full-tile cast).
                acc = weights[0] * x_ref[:, ys, 0:w_in].astype(f32)
                for j in range(1, k):
                    acc = acc + weights[j] * x_ref[:, ys, j:j + w_in].astype(f32)
                tmp_ref[:, ys, r:r + w_in] = acc.astype(tmp_ref.dtype)
            for c in border_cols:                      # at most 2r narrow columns
                col = None
                for j in range(k):
                    s = _reflect(c + j - r, W)
                    v = weights[j] * x_ref[:, ys, s:s + 1].astype(f32)
                    col = v if col is None else col + v
                tmp_ref[:, ys, c:c + 1] = col.astype(tmp_ref.dtype)

        # ---- Phase 2: vertical reflect gaussian fused with sharpen ----------
        #   out = clip(2*img - blur, 0, 1)
        for y in border_rows:                          # at most 2r single rows
            out = 2.0 * x_ref[:, y:y + 1, :].astype(f32)
            for j in range(k):
                s = _reflect(y + j - r, H)
                out = out - weights[j] * tmp_ref[:, s:s + 1, :].astype(f32)
            o_ref[:, y:y + 1, :] = jnp.clip(out, 0.0, 1.0).astype(o_ref.dtype)

        lo, hi = r, H - r                              # interior rows
        if hi > lo:
            for y0, rows in row_chunks(lo, hi):
                ys = slice(y0, y0 + rows)
                out = 2.0 * x_ref[:, ys, :].astype(f32)
                for j in range(k):
                    d = j - r
                    out = out - weights[j] * tmp_ref[:, y0 + d:y0 + d + rows, :].astype(f32)
                o_ref[:, ys, :] = jnp.clip(out, 0.0, 1.0).astype(o_ref.dtype)
        # TODO(synk): fuse phase 2 into phase 1 with a rolling r-row window to
        # cut tmp_ref reload traffic from ~k x tile to ~2 x tile.

    return kernel


def sharpen_pallas(img: jax.Array, kernel_size: int, *, channels_per_block=None) -> jax.Array:
    """Gaussian-blur-based sharpening of an NCHW float image via a Pallas TPU kernel."""
    if kernel_size < 1 or kernel_size % 2 == 0:
        raise ValueError("kernel_size must be a positive odd integer")
    if not jnp.issubdtype(img.dtype, jnp.floating):
        raise TypeError("sharpen_pallas expects a floating-point image in [0, 1]")
    B, C, H, W = img.shape
    r = kernel_size // 2
    if r >= H or r >= W:
        raise ValueError("kernel_size too large for image (reflect pad needs r < H, W)")

    sigma = _default_sigma(kernel_size)
    weights = [float(v) for v in _gaussian_kernel1d(kernel_size, sigma)]

    BC = B * C
    in_isz = jnp.dtype(img.dtype).itemsize
    tmp_dtype = jnp.bfloat16 if img.dtype == jnp.bfloat16 else jnp.float32
    tmp_isz = jnp.dtype(tmp_dtype).itemsize

    capacity = _vmem_capacity_bytes()                  # 64 MiB v7x, 128 MiB v5e/v6e
    budget = int(capacity * 0.35)
    vmem_limit = min(int(capacity * 0.7), 96 * 1024 * 1024)

    if channels_per_block is not None:
        ct = int(channels_per_block)
        if BC % ct:
            raise ValueError("channels_per_block must divide B*C")
    else:
        ct = _choose_channels_per_block(BC, H, W, in_isz, tmp_isz, budget)
    if ct is None:
        # TODO(synk): add a row-tiled Pallas path (overlapping element windows)
        # for planes too large to hold a full (1, H, W) block in VMEM.
        return _reference_sharpen(img, kernel_size)

    row_chunk = _choose_row_chunk(ct, H, W)
    kern = _make_sharpen_kernel(weights, H, W, row_chunk)

    x3 = img.reshape(BC, H, W)                         # free: contiguous NCHW reshape
    # TODO(synk): for W far from a multiple of 128 a lane-dense repack would
    # avoid masked vst lanes, but it would change the caller's NCHW layout.
    out3 = pl.pallas_call(
        kern,
        out_shape=jax.ShapeDtypeStruct((BC, H, W), img.dtype),
        grid=(BC // ct,),
        in_specs=[pl.BlockSpec((ct, H, W), lambda b: (b, 0, 0))],
        out_specs=pl.BlockSpec((ct, H, W), lambda b: (b, 0, 0)),
        scratch_shapes=[pltpu.VMEM((ct, H, W), tmp_dtype)],
        compiler_params=pltpu.CompilerParams(
            dimension_semantics=("parallel",),
            vmem_limit_bytes=vmem_limit,
        ),
    )(x3)
    return out3.reshape(B, C, H, W)


class RandomSharpenAugmentation:
    """JAX/Pallas port of the PyTorch module.  Randomness stays host-side
    (numpy), exactly as in the original forward()."""

    def __init__(self, min_kernel, max_kernel, p=0.5):
        # NOTE: mirrors the original exactly (range() excludes max_kernel).
        self.kernel_choices = list(range(min_kernel, max_kernel, 2))
        self.p = p

    def __call__(self, img: jax.Array) -> jax.Array:
        if np.random.random() < self.p:
            kernel = int(np.random.choice(self.kernel_choices))
            return sharpen_pallas(img, kernel)
        else:
            return img


if __name__ == "__main__":
    np.random.seed(0)
    img = jax.random.uniform(jax.random.PRNGKey(0), (2, 4, 16, 16), dtype=jnp.float32)

    # Exercise the module path (p=1.0 guarantees the kernel branch is taken).
    aug = RandomSharpenAugmentation(min_kernel=3, max_kernel=7, p=1.0)
    out = jax.block_until_ready(aug(img))
    assert out.shape == img.shape and out.dtype == img.dtype

    # Verify the Pallas kernel against the pure-JAX reference for both kernel choices.
    for ksz in (3, 5):
        got = jax.block_until_ready(sharpen_pallas(img, ksz))
        want = _reference_sharpen(img, ksz)
        np.testing.assert_allclose(np.asarray(got), np.asarray(want),
                                   rtol=1e-5, atol=1e-5)

    # Lane-dense shape exercising the in-kernel row chunking / border handling.
    img2 = jax.random.uniform(jax.random.PRNGKey(1), (1, 2, 64, 128), dtype=jnp.float32)
    got2 = jax.block_until_ready(sharpen_pallas(img2, 5))
    np.testing.assert_allclose(np.asarray(got2), np.asarray(_reference_sharpen(img2, 5)),
                               rtol=1e-5, atol=1e-5)

    # bf16 input: bf16 HBM streams and a bf16 horizontal-pass scratch.
    img3 = img.astype(jnp.bfloat16)
    got3 = jax.block_until_ready(sharpen_pallas(img3, 5))
    want3 = _reference_sharpen(img3.astype(jnp.float32), 5)
    np.testing.assert_allclose(np.asarray(got3.astype(jnp.float32)), np.asarray(want3),
                               rtol=0.0, atol=0.05)

    print("KERNEL_OK")
</pallas_src>

<mosaic_0001>
module attributes {stable_mosaic.version = 11 : i64} {
  func.func @kernel(%arg0: i32, %arg1: memref<4x16x16xf32, #tpu.memory_space<vmem>>, %arg2: memref<4x16x16xf32, #tpu.memory_space<vmem>>, %arg3: memref<4x16x16xf32, #tpu.memory_space<vmem>>) attributes {dimension_semantics = [#tpu.dimension_semantics<parallel>], iteration_bounds = array<i64: 2>, scalar_prefetch = 0 : i64, scratch_operands = 1 : i64, tpu.core_type = #tpu.core_type<tc>, window_params = [{transform_indices = @transform_0, window_bounds = array<i64: 4, 16, 16>}, {transform_indices = @transform_1, window_bounds = array<i64: 4, 16, 16>}]} {
    %c0 = arith.constant 0 : index
    %c0_0 = arith.constant 0 : index
    %c0_1 = arith.constant 0 : index
    %0 = vector.load %arg1[%c0, %c0_0, %c0_1] : memref<4x16x16xf32, #tpu.memory_space<vmem>>, vector<4x16x12xf32>
    %cst = arith.constant 0.0707663745 : f32
    %1 = vector.broadcast %cst : f32 to vector<4x16x12xf32>
    %2 = arith.mulf %1, %0 : vector<4x16x12xf32>
    %c0_2 = arith.constant 0 : index
    %c0_3 = arith.constant 0 : index
    %c1 = arith.constant 1 : index
    %3 = vector.load %arg1[%c0_2, %c0_3, %c1] : memref<4x16x16xf32, #tpu.memory_space<vmem>>, vector<4x16x12xf32>
    %cst_4 = arith.constant 0.244460404 : f32
    %4 = vector.broadcast %cst_4 : f32 to vector<4x16x12xf32>
    %5 = arith.mulf %4, %3 : vector<4x16x12xf32>
    %6 = arith.addf %2, %5 : vector<4x16x12xf32>
    %c0_5 = arith.constant 0 : index
    %c0_6 = arith.constant 0 : index
    %c2 = arith.constant 2 : index
    %7 = vector.load %arg1[%c0_5, %c0_6, %c2] : memref<4x16x16xf32, #tpu.memory_space<vmem>>, vector<4x16x12xf32>
    %cst_7 = arith.constant 0.369546473 : f32
    %8 = vector.broadcast %cst_7 : f32 to vector<4x16x12xf32>
    %9 = arith.mulf %8, %7 : vector<4x16x12xf32>
    %10 = arith.addf %6, %9 : vector<4x16x12xf32>
    %c0_8 = arith.constant 0 : index
    %c0_9 = arith.constant 0 : index
    %c3 = arith.constant 3 : index
    %11 = vector.load %arg1[%c0_8, %c0_9, %c3] : memref<4x16x16xf32, #tpu.memory_space<vmem>>, vector<4x16x12xf32>
    %cst_10 = arith.constant 0.244460404 : f32
    %12 = vector.broadcast %cst_10 : f32 to vector<4x16x12xf32>
    %13 = arith.mulf %12, %11 : vector<4x16x12xf32>
    %14 = arith.addf %10, %13 : vector<4x16x12xf32>
    %c0_11 = arith.constant 0 : index
    %c0_12 = arith.constant 0 : index
    %c4 = arith.constant 4 : index
    %15 = vector.load %arg1[%c0_11, %c0_12, %c4] : memref<4x16x16xf32, #tpu.memory_space<vmem>>, vector<4x16x12xf32>
    %cst_13 = arith.constant 0.0707663745 : f32
    %16 = vector.broadcast %cst_13 : f32 to vector<4x16x12xf32>
    %17 = arith.mulf %16, %15 : vector<4x16x12xf32>
    %18 = arith.addf %14, %17 : vector<4x16x12xf32>
    %c0_14 = arith.constant 0 : index
    %c0_15 = arith.constant 0 : index
    %c2_16 = arith.constant 2 : index
    %19 = vector.load %arg3[%c0_14, %c0_15, %c2_16] : memref<4x16x16xf32, #tpu.memory_space<vmem>>, vector<4x16x12xf32>
    tpu.vector_store %arg3[%c0_14, %c0_15, %c2_16], %18 {strides = array<i32>} : memref<4x16x16xf32, #tpu.memory_space<vmem>>, vector<4x16x12xf32>,
    %c0_17 = arith.constant 0 : index
    %c0_18 = arith.constant 0 : index
    %c2_19 = arith.constant 2 : index
    %20 = vector.load %arg1[%c0_17, %c0_18, %c2_19] : memref<4x16x16xf32, #tpu.memory_space<vmem>>, vector<4x16x1xf32>
    %cst_20 = arith.constant 0.0707663745 : f32
    %21 = vector.broadcast %cst_20 : f32 to vector<4x16x1xf32>
    %22 = arith.mulf %21, %20 : vector<4x16x1xf32>
    %c0_21 = arith.constant 0 : index
    %c0_22 = arith.constant 0 : index
    %c1_23 = arith.constant 1 : index
    %23 = vector.load %arg1[%c0_21, %c0_22, %c1_23] : memref<4x16x16xf32, #tpu.memory_space<vmem>>, vector<4x16x1xf32>
    %cst_24 = arith.constant 0.244460404 : f32
    %24 = vector.broadcast %cst_24 : f32 to vector<4x16x1xf32>
    %25 = arith.mulf %24, %23 : vector<4x16x1xf32>
    %26 = arith.addf %22, %25 : vector<4x16x1xf32>
    %c0_25 = arith.constant 0 : index
    %c0_26 = arith.constant 0 : index
    %c0_27 = arith.constant 0 : index
    %27 = vector.load %arg1[%c0_25, %c0_26, %c0_27] : memref<4x16x16xf32, #tpu.memory_space<vmem>>, vector<4x16x1xf32>
    %cst_28 = arith.constant 0.369546473 : f32
    %28 = vector.broadcast %cst_28 : f32 to vector<4x16x1xf32>
    %29 = arith.mulf %28, %27 : vector<4x16x1xf32>
    %30 = arith.addf %26, %29 : vector<4x16x1xf32>
    %c0_29 = arith.constant 0 : index
    %c0_30 = arith.constant 0 : index
    %c1_31 = arith.constant 1 : index
    %31 = vector.load %arg1[%c0_29, %c0_30, %c1_31] : memref<4x16x16xf32, #tpu.memory_space<vmem>>, vector<4x16x1xf32>
    %cst_32 = arith.constant 0.244460404 : f32
    %32 = vector.broadcast %cst_32 : f32 to vector<4x16x1xf32>
    %33 = arith.mulf %32, %31 : vector<4x16x1xf32>
    %34 = arith.addf %30, %33 : vector<4x16x1xf32>
    %c0_33 = arith.constant 0 : index
    %c0_34 = arith.constant 0 : index
    %c2_35 = arith.constant 2 : index
    %35 = vector.load %arg1[%c0_33, %c0_34, %c2_35] : memref<4x16x16xf32, #tpu.memory_space<vmem>>, vector<4x16x1xf32>
    %cst_36 = arith.constant 0.0707663745 : f32
    %36 = vector.broadcast %cst_36 : f32 to vector<4x16x1xf32>
    %37 = arith.mulf %36, %35 : vector<4x16x1xf32>
    %38 = arith.addf %34, %37 : vector<4x16x1xf32>
    %c0_37 = arith.constant 0 : index
    %c0_38 = arith.constant 0 : index
    %c0_39 = arith.constant 0 : index
    %39 = vector.load %arg3[%c0_37, %c0_38, %c0_39] : memref<4x16x16xf32, #tpu.memory_space<vmem>>, vector<4x16x1xf32>
    tpu.vector_store %arg3[%c0_37, %c0_38, %c0_39], %38 {strides = array<i32>} : memref<4x16x16xf32, #tpu.memory_space<vmem>>, vector<4x16x1xf32>,
    %c0_40 = arith.constant 0 : index
    %c0_41 = arith.constant 0 : index
    %c1_42 = arith.constant 1 : index
    %40 = vector.load %arg1[%c0_40, %c0_41, %c1_42] : memref<4x16x16xf32, #tpu.memory_space<vmem>>, vector<4x16x1xf32>
    %cst_43 = arith.constant 0.0707663745 : f32
    %41 = vector.broadcast %cst_43 : f32 to vector<4x16x1xf32>
    %42 = arith.mulf %41, %40 : vector<4x16x1xf32>
    %c0_44 = arith.constant 0 : index
    %c0_45 = arith.constant 0 : index
    %c0_46 = arith.constant 0 : index
    %43 = vector.load %arg1[%c0_44, %c0_45, %c0_46] : memref<4x16x16xf32, #tpu.memory_space<vmem>>, vector<4x16x1xf32>
    %cst_47 = arith.constant 0.244460404 : f32
    %44 = vector.broadcast %cst_47 : f32 to vector<4x16x1xf32>
    %45 = arith.mulf %44, %43 : vector<4x16x1xf32>
    %46 = arith.addf %42, %45 : vector<4x16x1xf32>
    %c0_48 = arith.constant 0 : index
    %c0_49 = arith.constant 0 : index
    %c1_50 = arith.constant 1 : index
    %47 = vector.load %arg1[%c0_48, %c0_49, %c1_50] : memref<4x16x16xf32, #tpu.memory_space<vmem>>, vector<4x16x1xf32>
    %cst_51 = arith.constant 0.369546473 : f32
    %48 = vector.broadcast %cst_51 : f32 to vector<4x16x1xf32>
    %49 = arith.mulf %48, %47 : vector<4x16x1xf32>
    %50 = arith.addf %46, %49 : vector<4x16x1xf32>
    %c0_52 = arith.constant 0 : index
    %c0_53 = arith.constant 0 : index
    %c2_54 = arith.constant 2 : index
    %51 = vector.load %arg1[%c0_52, %c0_53, %c2_54] : memref<4x16x16xf32, #tpu.memory_space<vmem>>, vector<4x16x1xf32>
    %cst_55 = arith.constant 0.244460404 : f32
    %52 = vector.broadcast %cst_55 : f32 to vector<4x16x1xf32>
    %53 = arith.mulf %52, %51 : vector<4x16x1xf32>
    %54 = arith.addf %50, %53 : vector<4x16x1xf32>
    %c0_56 = arith.constant 0 : index
    %c0_57 = arith.constant 0 : index
    %c3_58 = arith.constant 3 : index
    %55 = vector.load %arg1[%c0_56, %c0_57, %c3_58] : memref<4x16x16xf32, #tpu.memory_space<vmem>>, vector<4x16x1xf32>
    %cst_59 = arith.constant 0.0707663745 : f32
    %56 = vector.broadcast %cst_59 : f32 to vector<4x16x1xf32>
    %57 = arith.mulf %56, %55 : vector<4x16x1xf32>
    %58 = arith.addf %54, %57 : vector<4x16x1xf32>
    %c0_60 = arith.constant 0 : index
    %c0_61 = arith.constant 0 : index
    %c1_62 = arith.constant 1 : index
    %59 = vector.load %arg3[%c0_60, %c0_61, %c1_62] : memref<4x16x16xf32, #tpu.memory_space<vmem>>, vector<4x16x1xf32>
    tpu.vector_store %arg3[%c0_60, %c0_61, %c1_62], %58 {strides = array<i32>} : memref<4x16x16xf32, #tpu.memory_space<vmem>>, vector<4x16x1xf32>,
    %c0_63 = arith.constant 0 : index
    %c0_64 = arith.constant 0 : index
    %c12 = arith.constant 12 : index
    %60 = vector.load %arg1[%c0_63, %c0_64, %c12] : memref<4x16x16xf32, #tpu.memory_space<vmem>>, vector<4x16x1xf32>
    %cst_65 = arith.constant 0.0707663745 : f32
    %61 = vector.broadcast %cst_65 : f32 to vector<4x16x1xf32>
    %62 = arith.mulf %61, %60 : vector<4x16x1xf32>
    %c0_66 = arith.constant 0 : index
    %c0_67 = arith.constant 0 : index
    %c13 = arith.constant 13 : index
    %63 = vector.load %arg1[%c0_66, %c0_67, %c13] : memref<4x16x16xf32, #tpu.memory_space<vmem>>, vector<4x16x1xf32>
    %cst_68 = arith.constant 0.244460404 : f32
    %64 = vector.broadcast %cst_68 : f32 to vector<4x16x1xf32>
    %65 = arith.mulf %64, %63 : vector<4x16x1xf32>
    %66 = arith.addf %62, %65 : vector<4x16x1xf32>
    %c0_69 = arith.constant 0 : index
    %c0_70 = arith.constant 0 : index
    %c14 = arith.constant 14 : index
    %67 = vector.load %arg1[%c0_69, %c0_70, %c14] : memref<4x16x16xf32, #tpu.memory_space<vmem>>, vector<4x16x1xf32>
    %cst_71 = arith.constant 0.369546473 : f32
    %68 = vector.broadcast %cst_71 : f32 to vector<4x16x1xf32>
    %69 = arith.mulf %68, %67 : vector<4x16x1xf32>
    %70 = arith.addf %66, %69 : vector<4x16x1xf32>
    %c0_72 = arith.constant 0 : index
    %c0_73 = arith.constant 0 : index
    %c15 = arith.constant 15 : index
    %71 = vector.load %arg1[%c0_72, %c0_73, %c15] : memref<4x16x16xf32, #tpu.memory_space<vmem>>, vector<4x16x1xf32>
    %cst_74 = arith.constant 0.244460404 : f32
    %72 = vector.broadcast %cst_74 : f32 to vector<4x16x1xf32>
    %73 = arith.mulf %72, %71 : vector<4x16x1xf32>
    %74 = arith.addf %70, %73 : vector<4x16x1xf32>
    %c0_75 = arith.constant 0 : index
    %c0_76 = arith.constant 0 : index
    %c14_77 = arith.constant 14 : index
    %75 = vector.load %arg1[%c0_75, %c0_76, %c14_77] : memref<4x16x16xf32, #tpu.memory_space<vmem>>, vector<4x16x1xf32>
    %cst_78 = arith.constant 0.0707663745 : f32
    %76 = vector.broadcast %cst_78 : f32 to vector<4x16x1xf32>
    %77 = arith.mulf %76, %75 : vector<4x16x1xf32>
    %78 = arith.addf %74, %77 : vector<4x16x1xf32>
    %c0_79 = arith.constant 0 : index
    %c0_80 = arith.constant 0 : index
    %c14_81 = arith.constant 14 : index
    %79 = vector.load %arg3[%c0_79, %c0_80, %c14_81] : memref<4x16x16xf32, #tpu.memory_space<vmem>>, vector<4x16x1xf32>
    tpu.vector_store %arg3[%c0_79, %c0_80, %c14_81], %78 {strides = array<i32>} : memref<4x16x16xf32, #tpu.memory_space<vmem>>, vector<4x16x1xf32>,
    %c0_82 = arith.constant 0 : index
    %c0_83 = arith.constant 0 : index
    %c13_84 = arith.constant 13 : index
    %80 = vector.load %arg1[%c0_82, %c0_83, %c13_84] : memref<4x16x16xf32, #tpu.memory_space<vmem>>, vector<4x16x1xf32>
    %cst_85 = arith.constant 0.0707663745 : f32
    %81 = vector.broadcast %cst_85 : f32 to vector<4x16x1xf32>
    %82 = arith.mulf %81, %80 : vector<4x16x1xf32>
    %c0_86 = arith.constant 0 : index
    %c0_87 = arith.constant 0 : index
    %c14_88 = arith.constant 14 : index
    %83 = vector.load %arg1[%c0_86, %c0_87, %c14_88] : memref<4x16x16xf32, #tpu.memory_space<vmem>>, vector<4x16x1xf32>
    %cst_89 = arith.constant 0.244460404 : f32
    %84 = vector.broadcast %cst_89 : f32 to vector<4x16x1xf32>
    %85 = arith.mulf %84, %83 : vector<4x16x1xf32>
    %86 = arith.addf %82, %85 : vector<4x16x1xf32>
    %c0_90 = arith.constant 0 : index
    %c0_91 = arith.constant 0 : index
    %c15_92 = arith.constant 15 : index
    %87 = vector.load %arg1[%c0_90, %c0_91, %c15_92] : memref<4x16x16xf32, #tpu.memory_space<vmem>>, vector<4x16x1xf32>
    %cst_93 = arith.constant 0.369546473 : f32
    %88 = vector.broadcast %cst_93 : f32 to vector<4x16x1xf32>
    %89 = arith.mulf %88, %87 : vector<4x16x1xf32>
    %90 = arith.addf %86, %89 : vector<4x16x1xf32>
    %c0_94 = arith.constant 0 : index
    %c0_95 = arith.constant 0 : index
    %c14_96 = arith.constant 14 : index
    %91 = vector.load %arg1[%c0_94, %c0_95, %c14_96] : memref<4x16x16xf32, #tpu.memory_space<vmem>>, vector<4x16x1xf32>
    %cst_97 = arith.constant 0.244460404 : f32
    %92 = vector.broadcast %cst_97 : f32 to vector<4x16x1xf32>
    %93 = arith.mulf %92, %91 : vector<4x16x1xf32>
    %94 = arith.addf %90, %93 : vector<4x16x1xf32>
    %c0_98 = arith.constant 0 : index
    %c0_99 = arith.constant 0 : index
    %c13_100 = arith.constant 13 : index
    %95 = vector.load %arg1[%c0_98, %c0_99, %c13_100] : memref<4x16x16xf32, #tpu.memory_space<vmem>>, vector<4x16x1xf32>
    %cst_101 = arith.constant 0.0707663745 : f32
    %96 = vector.broadcast %cst_101 : f32 to vector<4x16x1xf32>
    %97 = arith.mulf %96, %95 : vector<4x16x1xf32>
    %98 = arith.addf %94, %97 : vector<4x16x1xf32>
    %c0_102 = arith.constant 0 : index
    %c0_103 = arith.constant 0 : index
    %c15_104 = arith.constant 15 : index
    %99 = vector.load %arg3[%c0_102, %c0_103, %c15_104] : memref<4x16x16xf32, #tpu.memory_space<vmem>>, vector<4x16x1xf32>
    tpu.vector_store %arg3[%c0_102, %c0_103, %c15_104], %98 {strides = array<i32>} : memref<4x16x16xf32, #tpu.memory_space<vmem>>, vector<4x16x1xf32>,
    %c0_105 = arith.constant 0 : index
    %c0_106 = arith.constant 0 : index
    %c0_107 = arith.constant 0 : index
    %100 = vector.load %arg1[%c0_105, %c0_106, %c0_107] : memref<4x16x16xf32, #tpu.memory_space<vmem>>, vector<4x1x16xf32>
    %cst_108 = arith.constant 2.000000e+00 : f32
    %101 = vector.broadcast %cst_108 : f32 to vector<4x1x16xf32>
    %102 = arith.mulf %101, %100 : vector<4x1x16xf32>
    %c0_109 = arith.constant 0 : index
    %c2_110 = arith.constant 2 : index
    %c0_111 = arith.constant 0 : index
    %103 = vector.load %arg3[%c0_109, %c2_110, %c0_111] : memref<4x16x16xf32, #tpu.memory_space<vmem>>, vector<4x1x16xf32>
    %cst_112 = arith.constant 0.0707663745 : f32
    %104 = vector.broadcast %cst_112 : f32 to vector<4x1x16xf32>
    %105 = arith.mulf %104, %103 : vector<4x1x16xf32>
    %106 = arith.subf %102, %105 : vector<4x1x16xf32>
    %c0_113 = arith.constant 0 : index
    %c1_114 = arith.constant 1 : index
    %c0_115 = arith.constant 0 : index
    %107 = vector.load %arg3[%c0_113, %c1_114, %c0_115] : memref<4x16x16xf32, #tpu.memory_space<vmem>>, vector<4x1x16xf32>
    %cst_116 = arith.constant 0.244460404 : f32
    %108 = vector.broadcast %cst_116 : f32 to vector<4x1x16xf32>
    %109 = arith.mulf %108, %107 : vector<4x1x16xf32>
    %110 = arith.subf %106, %109 : vector<4x1x16xf32>
    %c0_117 = arith.constant 0 : index
    %c0_118 = arith.constant 0 : index
    %c0_119 = arith.constant 0 : index
    %111 = vector.load %arg3[%c0_117, %c0_118, %c0_119] : memref<4x16x16xf32, #tpu.memory_space<vmem>>, vector<4x1x16xf32>
    %cst_120 = arith.constant 0.369546473 : f32
    %112 = vector.broadcast %cst_120 : f32 to vector<4x1x16xf32>
    %113 = arith.mulf %112, %111 : vector<4x1x16xf32>
    %114 = arith.subf %110, %113 : vector<4x1x16xf32>
    %c0_121 = arith.constant 0 : index
    %c1_122 = arith.constant 1 : index
    %c0_123 = arith.constant 0 : index
    %115 = vector.load %arg3[%c0_121, %c1_122, %c0_123] : memref<4x16x16xf32, #tpu.memory_space<vmem>>, vector<4x1x16xf32>
    %cst_124 = arith.constant 0.244460404 : f32
    %116 = vector.broadcast %cst_124 : f32 to vector<4x1x16xf32>
    %117 = arith.mulf %116, %115 : vector<4x1x16xf32>
    %118 = arith.subf %114, %117 : vector<4x1x16xf32>
    %c0_125 = arith.constant 0 : index
    %c2_126 = arith.constant 2 : index
    %c0_127 = arith.constant 0 : index
    %119 = vector.load %arg3[%c0_125, %c2_126, %c0_127] : memref<4x16x16xf32, #tpu.memory_space<vmem>>, vector<4x1x16xf32>
    %cst_128 = arith.constant 0.0707663745 : f32
    %120 = vector.broadcast %cst_128 : f32 to vector<4x1x16xf32>
    %121 = arith.mulf %120, %119 : vector<4x1x16xf32>
    %122 = arith.subf %118, %121 : vector<4x1x16xf32>
    %cst_129 = arith.constant 0.000000e+00 : f32
    %cst_130 = arith.constant 1.000000e+00 : f32
    %123 = vector.broadcast %cst_129 : f32 to vector<4x1x16xf32>
    %124 = arith.maximumf %123, %122 : vector<4x1x16xf32>
    %125 = vector.broadcast %cst_130 : f32 to vector<4x1x16xf32>
    %126 = arith.minimumf %125, %124 : vector<4x1x16xf32>
    %c0_131 = arith.constant 0 : index
    %c0_132 = arith.constant 0 : index
    %c0_133 = arith.constant 0 : index
    %127 = vector.load %arg2[%c0_131, %c0_132, %c0_133] : memref<4x16x16xf32, #tpu.memory_space<vmem>>, vector<4x1x16xf32>
    tpu.vector_store %arg2[%c0_131, %c0_132, %c0_133], %126 {strides = array<i32>} : memref<4x16x16xf32, #tpu.memory_space<vmem>>, vector<4x1x16xf32>,
    %c0_134 = arith.constant 0 : index
    %c1_135 = arith.constant 1 : index
    %c0_136 = arith.constant 0 : index
    %128 = vector.load %arg1[%c0_134, %c1_135, %c0_136] : memref<4x16x16xf32, #tpu.memory_space<vmem>>, vector<4x1x16xf32>
    %cst_137 = arith.constant 2.000000e+00 : f32
    %129 = vector.broadcast %cst_137 : f32 to vector<4x1x16xf32>
    %130 = arith.mulf %129, %128 : vector<4x1x16xf32>
    %c0_138 = arith.constant 0 : index
    %c1_139 = arith.constant 1 : index
    %c0_140 = arith.constant 0 : index
    %131 = vector.load %arg3[%c0_138, %c1_139, %c0_140] : memref<4x16x16xf32, #tpu.memory_space<vmem>>, vector<4x1x16xf32>
    %cst_141 = arith.constant 0.0707663745 : f32
    %132 = vector.broadcast %cst_141 : f32 to vector<4x1x16xf32>
    %133 = arith.mulf %132, %131 : vector<4x1x16xf32>
    %134 = arith.subf %130, %133 : vector<4x1x16xf32>
    %c0_142 = arith.constant 0 : index
    %c0_143 = arith.constant 0 : index
    %c0_144 = arith.constant 0 : index
    %135 = vector.load %arg3[%c0_142, %c0_143, %c0_144] : memref<4x16x16xf32, #tpu.memory_space<vmem>>, vector<4x1x16xf32>
    %cst_145 = arith.constant 0.244460404 : f32
    %136 = vector.broadcast %cst_145 : f32 to vector<4x1x16xf32>
    %137 = arith.mulf %136, %135 : vector<4x1x16xf32>
    %138 = arith.subf %134, %137 : vector<4x1x16xf32>
    %c0_146 = arith.constant 0 : index
    %c1_147 = arith.constant 1 : index
    %c0_148 = arith.constant 0 : index
    %139 = vector.load %arg3[%c0_146, %c1_147, %c0_148] : memref<4x16x16xf32, #tpu.memory_space<vmem>>, vector<4x1x16xf32>
    %cst_149 = arith.constant 0.369546473 : f32
    %140 = vector.broadcast %cst_149 : f32 to vector<4x1x16xf32>
    %141 = arith.mulf %140, %139 : vector<4x1x16xf32>
    %142 = arith.subf %138, %141 : vector<4x1x16xf32>
    %c0_150 = arith.constant 0 : index
    %c2_151 = arith.constant 2 : index
    %c0_152 = arith.constant 0 : index
    %143 = vector.load %arg3[%c0_150, %c2_151, %c0_152] : memref<4x16x16xf32, #tpu.memory_space<vmem>>, vector<4x1x16xf32>
    %cst_153 = arith.constant 0.244460404 : f32
    %144 = vector.broadcast %cst_153 : f32 to vector<4x1x16xf32>
    %145 = arith.mulf %144, %143 : vector<4x1x16xf32>
    %146 = arith.subf %142, %145 : vector<4x1x16xf32>
    %c0_154 = arith.constant 0 : index
    %c3_155 = arith.constant 3 : index
    %c0_156 = arith.constant 0 : index
    %147 = vector.load %arg3[%c0_154, %c3_155, %c0_156] : memref<4x16x16xf32, #tpu.memory_space<vmem>>, vector<4x1x16xf32>
    %cst_157 = arith.constant 0.0707663745 : f32
    %148 = vector.broadcast %cst_157 : f32 to vector<4x1x16xf32>
    %149 = arith.mulf %148, %147 : vector<4x1x16xf32>
    %150 = arith.subf %146, %149 : vector<4x1x16xf32>
    %cst_158 = arith.constant 0.000000e+00 : f32
    %cst_159 = arith.constant 1.000000e+00 : f32
    %151 = vector.broadcast %cst_158 : f32 to vector<4x1x16xf32>
    %152 = arith.maximumf %151, %150 : vector<4x1x16xf32>
    %153 = vector.broadcast %cst_159 : f32 to vector<4x1x16xf32>
    %154 = arith.minimumf %153, %152 : vector<4x1x16xf32>
    %c0_160 = arith.constant 0 : index
    %c1_161 = arith.constant 1 : index
    %c0_162 = arith.constant 0 : index
    %155 = vector.load %arg2[%c0_160, %c1_161, %c0_162] : memref<4x16x16xf32, #tpu.memory_space<vmem>>, vector<4x1x16xf32>
    tpu.vector_store %arg2[%c0_160, %c1_161, %c0_162], %154 {strides = array<i32>} : memref<4x16x16xf32, #tpu.memory_space<vmem>>, vector<4x1x16xf32>,
    %c0_163 = arith.constant 0 : index
    %c14_164 = arith.constant 14 : index
    %c0_165 = arith.constant 0 : index
    %156 = vector.load %arg1[%c0_163, %c14_164, %c0_165] : memref<4x16x16xf32, #tpu.memory_space<vmem>>, vector<4x1x16xf32>
    %cst_166 = arith.constant 2.000000e+00 : f32
    %157 = vector.broadcast %cst_166 : f32 to vector<4x1x16xf32>
    %158 = arith.mulf %157, %156 : vector<4x1x16xf32>
    %c0_167 = arith.constant 0 : index
    %c12_168 = arith.constant 12 : index
    %c0_169 = arith.constant 0 : index
    %159 = vector.load %arg3[%c0_167, %c12_168, %c0_169] : memref<4x16x16xf32, #tpu.memory_space<vmem>>, vector<4x1x16xf32>
    %cst_170 = arith.constant 0.0707663745 : f32
    %160 = vector.broadcast %cst_170 : f32 to vector<4x1x16xf32>
    %161 = arith.mulf %160, %159 : vector<4x1x16xf32>
    %162 = arith.subf %158, %161 : vector<4x1x16xf32>
    %c0_171 = arith.constant 0 : index
    %c13_172 = arith.constant 13 : index
    %c0_173 = arith.constant 0 : index
    %163 = vector.load %arg3[%c0_171, %c13_172, %c0_173] : memref<4x16x16xf32, #tpu.memory_space<vmem>>, vector<4x1x16xf32>
    %cst_174 = arith.constant 0.244460404 : f32
    %164 = vector.broadcast %cst_174 : f32 to vector<4x1x16xf32>
    %165 = arith.mulf %164, %163 : vector<4x1x16xf32>
    %166 = arith.subf %162, %165 : vector<4x1x16xf32>
    %c0_175 = arith.constant 0 : index
    %c14_176 = arith.constant 14 : index
    %c0_177 = arith.constant 0 : index
    %167 = vector.load %arg3[%c0_175, %c14_176, %c0_177] : memref<4x16x16xf32, #tpu.memory_space<vmem>>, vector<4x1x16xf32>
    %cst_178 = arith.constant 0.369546473 : f32
    %168 = vector.broadcast %cst_178 : f32 to vector<4x1x16xf32>
    %169 = arith.mulf %168, %167 : vector<4x1x16xf32>
    %170 = arith.subf %166, %169 : vector<4x1x16xf32>
    %c0_179 = arith.constant 0 : index
    %c15_180 = arith.constant 15 : index
    %c0_181 = arith.constant 0 : index
    %171 = vector.load %arg3[%c0_179, %c15_180, %c0_181] : memref<4x16x16xf32, #tpu.memory_space<vmem>>, vector<4x1x16xf32>
    %cst_182 = arith.constant 0.244460404 : f32
    %172 = vector.broadcast %cst_182 : f32 to vector<4x1x16xf32>
    %173 = arith.mulf %172, %171 : vector<4x1x16xf32>
    %174 = arith.subf %170, %173 : vector<4x1x16xf32>
    %c0_183 = arith.constant 0 : index
    %c14_184 = arith.constant 14 : index
    %c0_185 = arith.constant 0 : index
    %175 = vector.load %arg3[%c0_183, %c14_184, %c0_185] : memref<4x16x16xf32, #tpu.memory_space<vmem>>, vector<4x1x16xf32>
    %cst_186 = arith.constant 0.0707663745 : f32
    %176 = vector.broadcast %cst_186 : f32 to vector<4x1x16xf32>
    %177 = arith.mulf %176, %175 : vector<4x1x16xf32>
    %178 = arith.subf %174, %177 : vector<4x1x16xf32>
    %cst_187 = arith.constant 0.000000e+00 : f32
    %cst_188 = arith.constant 1.000000e+00 : f32
    %179 = vector.broadcast %cst_187 : f32 to vector<4x1x16xf32>
    %180 = arith.maximumf %179, %178 : vector<4x1x16xf32>
    %181 = vector.broadcast %cst_188 : f32 to vector<4x1x16xf32>
    %182 = arith.minimumf %181, %180 : vector<4x1x16xf32>
    %c0_189 = arith.constant 0 : index
    %c14_190 = arith.constant 14 : index
    %c0_191 = arith.constant 0 : index
    %183 = vector.load %arg2[%c0_189, %c14_190, %c0_191] : memref<4x16x16xf32, #tpu.memory_space<vmem>>, vector<4x1x16xf32>
    tpu.vector_store %arg2[%c0_189, %c14_190, %c0_191], %182 {strides = array<i32>} : memref<4x16x16xf32, #tpu.memory_space<vmem>>, vector<4x1x16xf32>,
    %c0_192 = arith.constant 0 : index
    %c15_193 = arith.constant 15 : index
    %c0_194 = arith.constant 0 : index
    %184 = vector.load %arg1[%c0_192, %c15_193, %c0_194] : memref<4x16x16xf32, #tpu.memory_space<vmem>>, vector<4x1x16xf32>
    %cst_195 = arith.constant 2.000000e+00 : f32
    %185 = vector.broadcast %cst_195 : f32 to vector<4x1x16xf32>
    %186 = arith.mulf %185, %184 : vector<4x1x16xf32>
    %c0_196 = arith.constant 0 : index
    %c13_197 = arith.constant 13 : index
    %c0_198 = arith.constant 0 : index
    %187 = vector.load %arg3[%c0_196, %c13_197, %c0_198] : memref<4x16x16xf32, #tpu.memory_space<vmem>>, vector<4x1x16xf32>
    %cst_199 = arith.constant 0.0707663745 : f32
    %188 = vector.broadcast %cst_199 : f32 to vector<4x1x16xf32>
    %189 = arith.mulf %188, %187 : vector<4x1x16xf32>
    %190 = arith.subf %186, %189 : vector<4x1x16xf32>
    %c0_200 = arith.constant 0 : index
    %c14_201 = arith.constant 14 : index
    %c0_202 = arith.constant 0 : index
    %191 = vector.load %arg3[%c0_200, %c14_201, %c0_202] : memref<4x16x16xf32, #tpu.memory_space<vmem>>, vector<4x1x16xf32>
    %cst_203 = arith.constant 0.244460404 : f32
    %192 = vector.broadcast %cst_203 : f32 to vector<4x1x16xf32>
    %193 = arith.mulf %192, %191 : vector<4x1x16xf32>
    %194 = arith.subf %190, %193 : vector<4x1x16xf32>
    %c0_204 = arith.constant 0 : index
    %c15_205 = arith.constant 15 : index
    %c0_206 = arith.constant 0 : index
    %195 = vector.load %arg3[%c0_204, %c15_205, %c0_206] : memref<4x16x16xf32, #tpu.memory_space<vmem>>, vector<4x1x16xf32>
    %cst_207 = arith.constant 0.369546473 : f32
    %196 = vector.broadcast %cst_207 : f32 to vector<4x1x16xf32>
    %197 = arith.mulf %196, %195 : vector<4x1x16xf32>
    %198 = arith.subf %194, %197 : vector<4x1x16xf32>
    %c0_208 = arith.constant 0 : index
    %c14_209 = arith.constant 14 : index
    %c0_210 = arith.constant 0 : index
    %199 = vector.load %arg3[%c0_208, %c14_209, %c0_210] : memref<4x16x16xf32, #tpu.memory_space<vmem>>, vector<4x1x16xf32>
    %cst_211 = arith.constant 0.244460404 : f32
    %200 = vector.broadcast %cst_211 : f32 to vector<4x1x16xf32>
    %201 = arith.mulf %200, %199 : vector<4x1x16xf32>
    %202 = arith.subf %198, %201 : vector<4x1x16xf32>
    %c0_212 = arith.constant 0 : index
    %c13_213 = arith.constant 13 : index
    %c0_214 = arith.constant 0 : index
    %203 = vector.load %arg3[%c0_212, %c13_213, %c0_214] : memref<4x16x16xf32, #tpu.memory_space<vmem>>, vector<4x1x16xf32>
    %cst_215 = arith.constant 0.0707663745 : f32
    %204 = vector.broadcast %cst_215 : f32 to vector<4x1x16xf32>
    %205 = arith.mulf %204, %203 : vector<4x1x16xf32>
    %206 = arith.subf %202, %205 : vector<4x1x16xf32>
    %cst_216 = arith.constant 0.000000e+00 : f32
    %cst_217 = arith.constant 1.000000e+00 : f32
    %207 = vector.broadcast %cst_216 : f32 to vector<4x1x16xf32>
    %208 = arith.maximumf %207, %206 : vector<4x1x16xf32>
    %209 = vector.broadcast %cst_217 : f32 to vector<4x1x16xf32>
    %210 = arith.minimumf %209, %208 : vector<4x1x16xf32>
    %c0_218 = arith.constant 0 : index
    %c15_219 = arith.constant 15 : index
    %c0_220 = arith.constant 0 : index
    %211 = vector.load %arg2[%c0_218, %c15_219, %c0_220] : memref<4x16x16xf32, #tpu.memory_space<vmem>>, vector<4x1x16xf32>
    tpu.vector_store %arg2[%c0_218, %c15_219, %c0_220], %210 {strides = array<i32>} : memref<4x16x16xf32, #tpu.memory_space<vmem>>, vector<4x1x16xf32>,
    %c0_221 = arith.constant 0 : index
    %c2_222 = arith.constant 2 : index
    %c0_223 = arith.constant 0 : index
    %212 = vector.load %arg1[%c0_221, %c2_222, %c0_223] : memref<4x16x16xf32, #tpu.memory_space<vmem>>, vector<4x12x16xf32>
    %cst_224 = arith.constant 2.000000e+00 : f32
    %213 = vector.broadcast %cst_224 : f32 to vector<4x12x16xf32>
    %214 = arith.mulf %213, %212 : vector<4x12x16xf32>
    %c0_225 = arith.constant 0 : index
    %c0_226 = arith.constant 0 : index
    %c0_227 = arith.constant 0 : index
    %215 = vector.load %arg3[%c0_225, %c0_226, %c0_227] : memref<4x16x16xf32, #tpu.memory_space<vmem>>, vector<4x12x16xf32>
    %cst_228 = arith.constant 0.0707663745 : f32
    %216 = vector.broadcast %cst_228 : f32 to vector<4x12x16xf32>
    %217 = arith.mulf %216, %215 : vector<4x12x16xf32>
    %218 = arith.subf %214, %217 : vector<4x12x16xf32>
    %c0_229 = arith.constant 0 : index
    %c1_230 = arith.constant 1 : index
    %c0_231 = arith.constant 0 : index
    %219 = vector.load %arg3[%c0_229, %c1_230, %c0_231] : memref<4x16x16xf32, #tpu.memory_space<vmem>>, vector<4x12x16xf32>
    %cst_232 = arith.constant 0.244460404 : f32
    %220 = vector.broadcast %cst_232 : f32 to vector<4x12x16xf32>
    %221 = arith.mulf %220, %219 : vector<4x12x16xf32>
    %222 = arith.subf %218, %221 : vector<4x12x16xf32>
    %c0_233 = arith.constant 0 : index
    %c2_234 = arith.constant 2 : index
    %c0_235 = arith.constant 0 : index
    %223 = vector.load %arg3[%c0_233, %c2_234, %c0_235] : memref<4x16x16xf32, #tpu.memory_space<vmem>>, vector<4x12x16xf32>
    %cst_236 = arith.constant 0.369546473 : f32
    %224 = vector.broadcast %cst_236 : f32 to vector<4x12x16xf32>
    %225 = arith.mulf %224, %223 : vector<4x12x16xf32>
    %226 = arith.subf %222, %225 : vector<4x12x16xf32>
    %c0_237 = arith.constant 0 : index
    %c3_238 = arith.constant 3 : index
    %c0_239 = arith.constant 0 : index
    %227 = vector.load %arg3[%c0_237, %c3_238, %c0_239] : memref<4x16x16xf32, #tpu.memory_space<vmem>>, vector<4x12x16xf32>
    %cst_240 = arith.constant 0.244460404 : f32
    %228 = vector.broadcast %cst_240 : f32 to vector<4x12x16xf32>
    %229 = arith.mulf %228, %227 : vector<4x12x16xf32>
    %230 = arith.subf %226, %229 : vector<4x12x16xf32>
    %c0_241 = arith.constant 0 : index
    %c4_242 = arith.constant 4 : index
    %c0_243 = arith.constant 0 : index
    %231 = vector.load %arg3[%c0_241, %c4_242, %c0_243] : memref<4x16x16xf32, #tpu.memory_space<vmem>>, vector<4x12x16xf32>
    %cst_244 = arith.constant 0.0707663745 : f32
    %232 = vector.broadcast %cst_244 : f32 to vector<4x12x16xf32>
    %233 = arith.mulf %232, %231 : vector<4x12x16xf32>
    %234 = arith.subf %230, %233 : vector<4x12x16xf32>
    %cst_245 = arith.constant 0.000000e+00 : f32
    %cst_246 = arith.constant 1.000000e+00 : f32
    %235 = vector.broadcast %cst_245 : f32 to vector<4x12x16xf32>
    %236 = arith.maximumf %235, %234 : vector<4x12x16xf32>
    %237 = vector.broadcast %cst_246 : f32 to vector<4x12x16xf32>
    %238 = arith.minimumf %237, %236 : vector<4x12x16xf32>
    %c0_247 = arith.constant 0 : index
    %c2_248 = arith.constant 2 : index
    %c0_249 = arith.constant 0 : index
    %239 = vector.load %arg2[%c0_247, %c2_248, %c0_249] : memref<4x16x16xf32, #tpu.memory_space<vmem>>, vector<4x12x16xf32>
    tpu.vector_store %arg2[%c0_247, %c2_248, %c0_249], %238 {strides = array<i32>} : memref<4x16x16xf32, #tpu.memory_space<vmem>>, vector<4x12x16xf32>,
    return
  }
  func.func @transform_0(%arg0: i32) -> (i32, i32, i32) {
    %c0_i32 = arith.constant 0 : i32
    %c0_i32_0 = arith.constant 0 : i32
    %c0_i32_1 = arith.constant 0 : i32
    return %arg0, %c0_i32, %c0_i32_0 : i32, i32, i32
  }
  func.func @transform_1(%arg0: i32) -> (i32, i32, i32) {
    %c0_i32 = arith.constant 0 : i32
    %c0_i32_0 = arith.constant 0 : i32
    %c0_i32_1 = arith.constant 0 : i32
    return %arg0, %c0_i32, %c0_i32_0 : i32, i32, i32
  }
}

</mosaic_0001>

<llo_original>
// kernel: tpu_custom_call.1
$region0: #{tpu_custom_call.1}
  #allocation0 [shape = 'u32[]', space=smem, size = 0x4, offset = 0x4, fixed_abs, tag = 'smem constant byte address 0x4 - core index']
  #allocation1 [shape = 'u32[144,128]{1,0:T(1,128)}', space=vmem, size = 0x12000, scoped, tag = 'internal scratch']
  #allocation2 [shape = 'f32[4,16,16]{2,1,0:T(8,128)}', space=vmem, size = 0x8000, scoped, tag = 'scratch operand']
  %s0 = inlined_call_operand.hbm [shape: f32[8,16,16], index: 0, kind: input, shape index: {}]
  %s1 = inlined_call_operand.hbm [shape: f32[8,16,16], index: 1, kind: output, shape index: {}]
  %s2 = sld [smem:[#allocation0]]
  $region41: #{tpu_custom_call.1} parent=0
    _
  %s4 = ssub.s32 1, %s2
  %s5 = scalar_select 0, %s4, %s2
  $region1: #{tpu_custom_call.1} parent=0
    #allocation3 [shape = 'u8[65536]{0}', space=vmem, size = 0x10000, scoped, tag = 'input window, operand 0']
    #allocation4 [shape = 's32[2]{0}', space=sflag, size = 0x8, scoped, tag = 'scoped memory for tpu_custom_call.1']
    #allocation5 [shape = 's32[2]{0}', space=sflag, size = 0x8, scoped, tag = 'scoped memory for tpu_custom_call.1']
    #allocation6 [shape = 'u8[65536]{0}', space=vmem, size = 0x10000, scoped, tag = 'output window, operand 0']
    %6 = vsyncpa [#allocation4], 0
    %s7 = scalar_lea.sflag [#allocation4], 1
    %8 = vsyncpa %s7, 0
    %9 = vsyncpa [#allocation5], 0
    %s10 = scalar_lea.sflag [#allocation5], 1
    %11 = vsyncpa %s10, 0
    loop: start=0, step=1, limit=4
    $region2: #{tpu_custom_call.1} parent=1 // loop_pre_header
      _
    $region3: #{tpu_custom_call.1} parent=1 // loop_header
      %s13 = sphi 0, %s17
      %p14 = scmp.ge.s32.totalorder %s13, 4
      %s23 = sphi 0, %s25
      %s26 = sphi 0, %s23
      %s27 = sphi 0, %s26
      %s43 = sphi 0, %s27
      %s49 = sphi 0, %s51
      %s52 = sphi 0, %s49
      %s53 = sphi 0, %s52
      %s69 = sphi 0, %s53
    $region4: #{tpu_custom_call.1} parent=1 // loop_header_branch
      %16 = sbr.rel (%p14) target = $region8
    $region5: #{tpu_custom_call.1} parent=1 // loop_body
      %s18 = ssub.s32 %s13, 1
      %s19 = ssub.s32 %s13, 2
      %s20 = sadd.s32 %s13, 1
      %s21 = ssub.s32 %s13, %s20
      %p22 = scmp.eq.s32.totalorder %s21, 0
      %s24 = sadd.s32 %s23, 1
      %s25 = scalar_select %p22, %s23, %s24
      %p28 = pneg %p22
      %p29 = scmp.eq.s32.totalorder %s13, 1
      %p30 = por %p28, %p29
      %p31 = scmp.ne.s32.totalorder %s23, %s26
      %p32 = scmp.eq.s32.totalorder %s13, 0
      %p33 = por %p31, %p32
      %p34 = scmp.ne.s32.totalorder %s23, %s26
      %p35 = scmp.eq.s32.totalorder %s18, 1
      %p36 = por %p34, %p35
      %p37 = scmp.ne.s32.totalorder %s26, %s27
      %p38 = scmp.eq.s32.totalorder %s18, 0
      %p39 = por %p37, %p38
      %p40 = scmp.ne.s32.totalorder %s26, %s27
      %p41 = scmp.eq.s32.totalorder %s19, 1
      %p42 = por %p40, %p41
      %p44 = scmp.ne.s32.totalorder %s27, %s43
      %p45 = scmp.eq.s32.totalorder %s19, 0
      %p46 = por %p44, %p45
      %s47 = ssub.s32 %s13, %s20
      %p48 = scmp.eq.s32.totalorder %s47, 0
      %s50 = sadd.s32 %s49, 1
      %s51 = scalar_select %p48, %s49, %s50
      %p54 = pneg %p48
      %p55 = scmp.eq.s32.totalorder %s13, 1
      %p56 = por %p54, %p55
      %p57 = scmp.ne.s32.totalorder %s49, %s52
      %p58 = scmp.eq.s32.totalorder %s13, 0
      %p59 = por %p57, %p58
      %p60 = scmp.ne.s32.totalorder %s49, %s52
      %p61 = scmp.eq.s32.totalorder %s18, 1
      %p62 = por %p60, %p61
      %p63 = scmp.ne.s32.totalorder %s52, %s53
      %p64 = scmp.eq.s32.totalorder %s18, 0
      %p65 = por %p63, %p64
      %p66 = scmp.ne.s32.totalorder %s52, %s53
      %p67 = scmp.eq.s32.totalorder %s19, 1
      %p68 = por %p66, %p67
      %p70 = scmp.ne.s32.totalorder %s53, %s69
      %p71 = scmp.eq.s32.totalorder %s19, 0
      %p72 = por %p70, %p71
      %p73 = scmp.le.s32.totalorder 1, %s13
      %p74 = scmp.lt.s32.totalorder %s13, 3
      %p75 = pnand %p73, %p74
      %p76 = pneg %p75
      // Predicated region
      $region9: #{tpu_custom_call.1} parent=5 // pred_check
        _
      $region10: #{tpu_custom_call.1} parent=5 // pred_check_branch
        %78 = sbr.rel (%p75) target = $region12
      $region11: #{tpu_custom_call.1} parent=5 // pred_region
        %s79 = ssub.s32 %s13, 1
      $region12: #{tpu_custom_call.1} parent=5 // pred_fallthru
        _
      %p80 = scmp.lt.s32.totalorder %s13, 2
      // Predicated region
      $region13: #{tpu_custom_call.1} parent=5 // pred_check
        %p81 = pneg %p80
      $region14: #{tpu_custom_call.1} parent=5 // pred_check_branch
        %83 = sbr.rel (%p81) target = $region16
      $region15: #{tpu_custom_call.1} parent=5 // pred_region
        // Predicated region
        $region17: #{tpu_custom_call.1} parent=15 // pred_check
          %p84 = pneg %p33
        $region18: #{tpu_custom_call.1} parent=15 // pred_check_branch
          %86 = sbr.rel (%p84) target = $region20
        $region19: #{tpu_custom_call.1} parent=15 // pred_region
          %s87 = sand.u32 %s23, 1
          %s88 = scalar_lea.sflag [#allocation4], %s87
          %s89 = sand.u32 %s23, 1
          %s90 = smul.addr %s89, 64
          %s91 = scalar_lea.vmem [#allocation3], %s90
          %s92 = smul.u32 4, %s13
          %s94 = ssub.s32 1024, 1024
          %95 = vsyncadd %s88, %s94
          %s96 = smul.addr %s92, 2
          %s97 = smul.addr %s96, 128
          %s98 = scalar_lea.hbm %s0, %s97
          %s99 = sshll.u32 %s91, 4
          %s100 = int_to_ptr.vmem [resolvable:$true] %s99
          %105 = dma.hbm_to_vmem [thread:$0]  %s98, 1024, %s100, %s88, 128, 128, 8
        $region20: #{tpu_custom_call.1} parent=15 // pred_fallthru
          _
      $region16: #{tpu_custom_call.1} parent=5 // pred_fallthru
        _
      %p106 = scmp.le.s32.totalorder 1, %s13
      %p107 = scmp.lt.s32.totalorder %s13, 3
      %p108 = pnand %p106, %p107
      %p109 = pneg %p108
      // Predicated region
      $region21: #{tpu_custom_call.1} parent=5 // pred_check
        _
      $region22: #{tpu_custom_call.1} parent=5 // pred_check_branch
        %111 = sbr.rel (%p108) target = $region24
      $region23: #{tpu_custom_call.1} parent=5 // pred_region
        %s112 = ssub.s32 %s13, 1
        %s113 = sand.u32 %s26, 1
        %s114 = scalar_lea.sflag [#allocation4], %s113
        %s115 = sand.u32 %s26, 1
        %s116 = smul.addr %s115, 64
        %s117 = scalar_lea.vmem [#allocation3], %s116
        // Predicated region
        $region25: #{tpu_custom_call.1} parent=23 // pred_check
          %p118 = pneg %p39
        $region26: #{tpu_custom_call.1} parent=23 // pred_check_branch
          %120 = sbr.rel (%p118) target = $region28
        $region27: #{tpu_custom_call.1} parent=23 // pred_region
          %121 = dma.done %s114, 1024
        $region28: #{tpu_custom_call.1} parent=23 // pred_fallthru
          _
        %s122 = sand.u32 %s26, 1
        %s123 = scalar_lea.sflag [#allocation4], %s122
        %s124 = sand.u32 %s26, 1
        %s125 = smul.addr %s124, 64
        %s126 = scalar_lea.vmem [#allocation3], %s125
        %p127 = pneg %p39
        %p128 = pneg %p36
        %p129 = pneg %p65
        %p130 = pneg %p62
        %s131 = sand.u32 %s52, 1
        %s132 = scalar_lea.sflag [#allocation5], %s131
        %s133 = sand.u32 %s52, 1
        %s134 = smul.addr %s133, 64
        %s135 = scalar_lea.vmem [#allocation6], %s134
        %s136 = smul.u32 4, %s18
        %s137 = smul.u32 4, %s18
        %v138 = vld [vmem:[%s117] sm:$0xff]
        %v139 = vld [vmem:[%s117 + $0x8] sm:$0xff]
        %v140 = vld [vmem:[%s117 + $0x10] sm:$0xff]
        %v141 = vld [vmem:[%s117 + $0x18] sm:$0xff]
        %v142 = vld [vmem:[%s117 + $0x20] sm:$0xff]
        %v143 = vld [vmem:[%s117 + $0x28] sm:$0xff]
        %v144 = vld [vmem:[%s117 + $0x30] sm:$0xff]
        %v145 = vld [vmem:[%s117 + $0x38] sm:$0xff]
        %v146 = vmul.f32 %v138, 0.070766374
        %v147 = vmul.f32 %v139, 0.070766374
        %v148 = vmul.f32 %v140, 0.070766374
        %v149 = vmul.f32 %v141, 0.070766374
        %v150 = vmul.f32 %v142, 0.070766374
        %v151 = vmul.f32 %v143, 0.070766374
        %v152 = vmul.f32 %v144, 0.070766374
        %v153 = vmul.f32 %v145, 0.070766374
        %v154 = vmul.f32 %v138, 0.2444604
        %v155 = vmul.f32 %v139, 0.2444604
        %v156 = vmul.f32 %v140, 0.2444604
        %v157 = vmul.f32 %v141, 0.2444604
        %v158 = vmul.f32 %v142, 0.2444604
        %v159 = vmul.f32 %v143, 0.2444604
        %v160 = vmul.f32 %v144, 0.2444604
        %v161 = vmul.f32 %v145, 0.2444604
        %170 = vrot.lane.b32.xlu0 %v154, 127
        %v171 = vpop.permute.xlu0 %170
        %172 = vrot.lane.b32.xlu0 %v155, 127
        %v173 = vpop.permute.xlu0 %172
        %174 = vrot.lane.b32.xlu0 %v156, 127
        %v175 = vpop.permute.xlu0 %174
        %176 = vrot.lane.b32.xlu0 %v157, 127
        %v177 = vpop.permute.xlu0 %176
        %178 = vrot.lane.b32.xlu0 %v158, 127
        %v179 = vpop.permute.xlu0 %178
        %180 = vrot.lane.b32.xlu0 %v159, 127
        %v181 = vpop.permute.xlu0 %180
        %182 = vrot.lane.b32.xlu0 %v160, 127
        %v183 = vpop.permute.xlu0 %182
        %184 = vrot.lane.b32.xlu0 %v161, 127
        %v185 = vpop.permute.xlu0 %184
        %v194 = vadd.f32 %v146, %v171
        %v195 = vadd.f32 %v147, %v173
        %v196 = vadd.f32 %v148, %v175
        %v197 = vadd.f32 %v149, %v177
        %v198 = vadd.f32 %v150, %v179
        %v199 = vadd.f32 %v151, %v181
        %v200 = vadd.f32 %v152, %v183
        %v201 = vadd.f32 %v153, %v185
        %v202 = vmul.f32 %v138, 0.36954647
        %v203 = vmul.f32 %v139, 0.36954647
        %v204 = vmul.f32 %v140, 0.36954647
        %v205 = vmul.f32 %v141, 0.36954647
        %v206 = vmul.f32 %v142, 0.36954647
        %v207 = vmul.f32 %v143, 0.36954647
        %v208 = vmul.f32 %v144, 0.36954647
        %v209 = vmul.f32 %v145, 0.36954647
        %218 = vrot.lane.b32.xlu0 %v202, 126
        %v219 = vpop.permute.xlu0 %218
        %220 = vrot.lane.b32.xlu0 %v203, 126
        %v221 = vpop.permute.xlu0 %220
        %222 = vrot.lane.b32.xlu0 %v204, 126
        %v223 = vpop.permute.xlu0 %222
        %224 = vrot.lane.b32.xlu0 %v205, 126
        %v225 = vpop.permute.xlu0 %224
        %226 = vrot.lane.b32.xlu0 %v206, 126
        %v227 = vpop.permute.xlu0 %226
        %228 = vrot.lane.b32.xlu0 %v207, 126
        %v229 = vpop.permute.xlu0 %228
        %230 = vrot.lane.b32.xlu0 %v208, 126
        %v231 = vpop.permute.xlu0 %230
        %232 = vrot.lane.b32.xlu0 %v209, 126
        %v233 = vpop.permute.xlu0 %232
        %v242 = vadd.f32 %v194, %v219
        %v243 = vadd.f32 %v195, %v221
        %v244 = vadd.f32 %v196, %v223
        %v245 = vadd.f32 %v197, %v225
        %v246 = vadd.f32 %v198, %v227
        %v247 = vadd.f32 %v199, %v229
        %v248 = vadd.f32 %v200, %v231
        %v249 = vadd.f32 %v201, %v233
        %250 = vrot.lane.b32.xlu0 %v154, 125
        %v251 = vpop.permute.xlu0 %250
        %252 = vrot.lane.b32.xlu0 %v155, 125
        %v253 = vpop.permute.xlu0 %252
        %254 = vrot.lane.b32.xlu0 %v156, 125
        %v255 = vpop.permute.xlu0 %254
        %256 = vrot.lane.b32.xlu0 %v157, 125
        %v257 = vpop.permute.xlu0 %256
        %258 = vrot.lane.b32.xlu0 %v158, 125
        %v259 = vpop.permute.xlu0 %258
        %260 = vrot.lane.b32.xlu0 %v159, 125
        %v261 = vpop.permute.xlu0 %260
        %262 = vrot.lane.b32.xlu0 %v160, 125
        %v263 = vpop.permute.xlu0 %262
        %264 = vrot.lane.b32.xlu0 %v161, 125
        %v265 = vpop.permute.xlu0 %264
        %v274 = vadd.f32 %v242, %v251
        %v275 = vadd.f32 %v243, %v253
        %v276 = vadd.f32 %v244, %v255
        %v277 = vadd.f32 %v245, %v257
        %v278 = vadd.f32 %v246, %v259
        %v279 = vadd.f32 %v247, %v261
        %v280 = vadd.f32 %v248, %v263
        %v281 = vadd.f32 %v249, %v265
        %290 = vrot.lane.b32.xlu0 %v146, 124
        %v291 = vpop.permute.xlu0 %290
        %292 = vrot.lane.b32.xlu0 %v147, 124
        %v293 = vpop.permute.xlu0 %292
        %294 = vrot.lane.b32.xlu0 %v148, 124
        %v295 = vpop.permute.xlu0 %294
        %296 = vrot.lane.b32.xlu0 %v149, 124
        %v297 = vpop.permute.xlu0 %296
        %298 = vrot.lane.b32.xlu0 %v150, 124
        %v299 = vpop.permute.xlu0 %298
        %300 = vrot.lane.b32.xlu0 %v151, 124
        %v301 = vpop.permute.xlu0 %300
        %302 = vrot.lane.b32.xlu0 %v152, 124
        %v303 = vpop.permute.xlu0 %302
        %304 = vrot.lane.b32.xlu0 %v153, 124
        %v305 = vpop.permute.xlu0 %304
        %v314 = vadd.f32 %v274, %v291
        %v315 = vadd.f32 %v275, %v293
        %v316 = vadd.f32 %v276, %v295
        %v317 = vadd.f32 %v277, %v297
        %v318 = vadd.f32 %v278, %v299
        %v319 = vadd.f32 %v279, %v301
        %v320 = vadd.f32 %v280, %v303
        %v321 = vadd.f32 %v281, %v305
        %330 = vrot.lane.b32.xlu0 %v314, 2
        %v331 = vpop.permute.xlu0 %330
        %332 = vrot.lane.b32.xlu0 %v315, 2
        %v333 = vpop.permute.xlu0 %332
        %334 = vrot.lane.b32.xlu0 %v316, 2
        %v335 = vpop.permute.xlu0 %334
        %336 = vrot.lane.b32.xlu0 %v317, 2
        %v337 = vpop.permute.xlu0 %336
        %338 = vrot.lane.b32.xlu0 %v318, 2
        %v339 = vpop.permute.xlu0 %338
        %340 = vrot.lane.b32.xlu0 %v319, 2
        %v341 = vpop.permute.xlu0 %340
        %342 = vrot.lane.b32.xlu0 %v320, 2
        %v343 = vpop.permute.xlu0 %342
        %344 = vrot.lane.b32.xlu0 %v321, 2
        %v345 = vpop.permute.xlu0 %344
        %vm354 = vcmask 113680
        %355 = vst.msk [vmem:[#allocation2] sm:$0xff] %vm354, %v331
        %356 = vst.msk [vmem:[#allocation2 + $0x8] sm:$0xff] %vm354, %v333
        %357 = vst.msk [vmem:[#allocation2 + $0x10] sm:$0xff] %vm354, %v335
        %358 = vst.msk [vmem:[#allocation2 + $0x18] sm:$0xff] %vm354, %v337
        %359 = vst.msk [vmem:[#allocation2 + $0x20] sm:$0xff] %vm354, %v339
        %360 = vst.msk [vmem:[#allocation2 + $0x28] sm:$0xff] %vm354, %v341
        %361 = vst.msk [vmem:[#allocation2 + $0x30] sm:$0xff] %vm354, %v343
        %362 = vst.msk [vmem:[#allocation2 + $0x38] sm:$0xff] %vm354, %v345
        %v363 = vld [vmem:[%s117] sm:$0xff]
        %v364 = vld [vmem:[%s117 + $0x8] sm:$0xff]
        %v365 = vld [vmem:[%s117 + $0x10] sm:$0xff]
        %v366 = vld [vmem:[%s117 + $0x18] sm:$0xff]
        %v367 = vld [vmem:[%s117 + $0x20] sm:$0xff]
        %v368 = vld [vmem:[%s117 + $0x28] sm:$0xff]
        %v369 = vld [vmem:[%s117 + $0x30] sm:$0xff]
        %v370 = vld [vmem:[%s117 + $0x38] sm:$0xff]
        %v371 = vmul.f32 %v363, 0.070766374
        %v372 = vmul.f32 %v364, 0.070766374
        %v373 = vmul.f32 %v365, 0.070766374
        %v374 = vmul.f32 %v366, 0.070766374
        %v375 = vmul.f32 %v367, 0.070766374
        %v376 = vmul.f32 %v368, 0.070766374
        %v377 = vmul.f32 %v369, 0.070766374
        %v378 = vmul.f32 %v370, 0.070766374
        %v379 = vmul.f32 %v363, 0.2444604
        %v380 = vmul.f32 %v364, 0.2444604
        %v381 = vmul.f32 %v365, 0.2444604
        %v382 = vmul.f32 %v366, 0.2444604
        %v383 = vmul.f32 %v367, 0.2444604
        %v384 = vmul.f32 %v368, 0.2444604
        %v385 = vmul.f32 %v369, 0.2444604
        %v386 = vmul.f32 %v370, 0.2444604
        %395 = vrot.lane.b32.xlu0 %v379, 1
        %v396 = vpop.permute.xlu0 %395
        %397 = vrot.lane.b32.xlu0 %v380, 1
        %v398 = vpop.permute.xlu0 %397
        %399 = vrot.lane.b32.xlu0 %v381, 1
        %v400 = vpop.permute.xlu0 %399
        %401 = vrot.lane.b32.xlu0 %v382, 1
        %v402 = vpop.permute.xlu0 %401
        %403 = vrot.lane.b32.xlu0 %v383, 1
        %v404 = vpop.permute.xlu0 %403
        %405 = vrot.lane.b32.xlu0 %v384, 1
        %v406 = vpop.permute.xlu0 %405
        %407 = vrot.lane.b32.xlu0 %v385, 1
        %v408 = vpop.permute.xlu0 %407
        %409 = vrot.lane.b32.xlu0 %v386, 1
        %v410 = vpop.permute.xlu0 %409
        %v419 = vadd.f32 %v371, %v396
        %v420 = vadd.f32 %v372, %v398
        %v421 = vadd.f32 %v373, %v400
        %v422 = vadd.f32 %v374, %v402
        %v423 = vadd.f32 %v375, %v404
        %v424 = vadd.f32 %v376, %v406
        %v425 = vadd.f32 %v377, %v408
        %v426 = vadd.f32 %v378, %v410
        %v427 = vmul.f32 %v363, 0.36954647
        %v428 = vmul.f32 %v364, 0.36954647
        %v429 = vmul.f32 %v365, 0.36954647
        %v430 = vmul.f32 %v366, 0.36954647
        %v431 = vmul.f32 %v367, 0.36954647
        %v432 = vmul.f32 %v368, 0.36954647
        %v433 = vmul.f32 %v369, 0.36954647
        %v434 = vmul.f32 %v370, 0.36954647
        %443 = vrot.lane.b32.xlu0 %v427, 2
        %v444 = vpop.permute.xlu0 %443
        %445 = vrot.lane.b32.xlu0 %v428, 2
        %v446 = vpop.permute.xlu0 %445
        %447 = vrot.lane.b32.xlu0 %v429, 2
        %v448 = vpop.permute.xlu0 %447
        %449 = vrot.lane.b32.xlu0 %v430, 2
        %v450 = vpop.permute.xlu0 %449
        %451 = vrot.lane.b32.xlu0 %v431, 2
        %v452 = vpop.permute.xlu0 %451
        %453 = vrot.lane.b32.xlu0 %v432, 2
        %v454 = vpop.permute.xlu0 %453
        %455 = vrot.lane.b32.xlu0 %v433, 2
        %v456 = vpop.permute.xlu0 %455
        %457 = vrot.lane.b32.xlu0 %v434, 2
        %v458 = vpop.permute.xlu0 %457
        %v467 = vadd.f32 %v419, %v444
        %v468 = vadd.f32 %v420, %v446
        %v469 = vadd.f32 %v421, %v448
        %v470 = vadd.f32 %v422, %v450
        %v471 = vadd.f32 %v423, %v452
        %v472 = vadd.f32 %v424, %v454
        %v473 = vadd.f32 %v425, %v456
        %v474 = vadd.f32 %v426, %v458
        %v475 = vadd.f32 %v467, %v396
        %v476 = vadd.f32 %v468, %v398
        %v477 = vadd.f32 %v469, %v400
        %v478 = vadd.f32 %v470, %v402
        %v479 = vadd.f32 %v471, %v404
        %v480 = vadd.f32 %v472, %v406
        %v481 = vadd.f32 %v473, %v408
        %v482 = vadd.f32 %v474, %v410
        %v483 = vadd.f32 %v475, %v371
        %v484 = vadd.f32 %v476, %v372
        %v485 = vadd.f32 %v477, %v373
        %v486 = vadd.f32 %v478, %v374
        %v487 = vadd.f32 %v479, %v375
        %v488 = vadd.f32 %v480, %v376
        %v489 = vadd.f32 %v481, %v377
        %v490 = vadd.f32 %v482, %v378
        %499 = vrot.lane.b32.xlu0 %v483, 126
        %v500 = vpop.permute.xlu0 %499
        %501 = vrot.lane.b32.xlu0 %v484, 126
        %v502 = vpop.permute.xlu0 %501
        %503 = vrot.lane.b32.xlu0 %v485, 126
        %v504 = vpop.permute.xlu0 %503
        %505 = vrot.lane.b32.xlu0 %v486, 126
        %v506 = vpop.permute.xlu0 %505
        %507 = vrot.lane.b32.xlu0 %v487, 126
        %v508 = vpop.permute.xlu0 %507
        %509 = vrot.lane.b32.xlu0 %v488, 126
        %v510 = vpop.permute.xlu0 %509
        %511 = vrot.lane.b32.xlu0 %v489, 126
        %v512 = vpop.permute.xlu0 %511
        %513 = vrot.lane.b32.xlu0 %v490, 126
        %v514 = vpop.permute.xlu0 %513
        %vm523 = vcmask 7168
        %524 = vst.msk [vmem:[#allocation2] sm:$0xff] %vm523, %v500
        %525 = vst.msk [vmem:[#allocation2 + $0x8] sm:$0xff] %vm523, %v502
        %526 = vst.msk [vmem:[#allocation2 + $0x10] sm:$0xff] %vm523, %v504
        %527 = vst.msk [vmem:[#allocation2 + $0x18] sm:$0xff] %vm523, %v506
        %528 = vst.msk [vmem:[#allocation2 + $0x20] sm:$0xff] %vm523, %v508
        %529 = vst.msk [vmem:[#allocation2 + $0x28] sm:$0xff] %vm523, %v510
        %530 = vst.msk [vmem:[#allocation2 + $0x30] sm:$0xff] %vm523, %v512
        %531 = vst.msk [vmem:[#allocation2 + $0x38] sm:$0xff] %vm523, %v514
        %v532 = vld [vmem:[%s117] sm:$0xff]
        %v533 = vld [vmem:[%s117 + $0x8] sm:$0xff]
        %v534 = vld [vmem:[%s117 + $0x10] sm:$0xff]
        %v535 = vld [vmem:[%s117 + $0x18] sm:$0xff]
        %v536 = vld [vmem:[%s117 + $0x20] sm:$0xff]
        %v537 = vld [vmem:[%s117 + $0x28] sm:$0xff]
        %v538 = vld [vmem:[%s117 + $0x30] sm:$0xff]
        %v539 = vld [vmem:[%s117 + $0x38] sm:$0xff]
        %v540 = vmul.f32 %v532, 0.070766374
        %v541 = vmul.f32 %v533, 0.070766374
        %v542 = vmul.f32 %v534, 0.070766374
        %v543 = vmul.f32 %v535, 0.070766374
        %v544 = vmul.f32 %v536, 0.070766374
        %v545 = vmul.f32 %v537, 0.070766374
        %v546 = vmul.f32 %v538, 0.070766374
        %v547 = vmul.f32 %v539, 0.070766374
        %v548 = vmul.f32 %v532, 0.2444604
        %v549 = vmul.f32 %v533, 0.2444604
        %v550 = vmul.f32 %v534, 0.2444604
        %v551 = vmul.f32 %v535, 0.2444604
        %v552 = vmul.f32 %v536, 0.2444604
        %v553 = vmul.f32 %v537, 0.2444604
        %v554 = vmul.f32 %v538, 0.2444604
        %v555 = vmul.f32 %v539, 0.2444604
        %564 = vrot.lane.b32.xlu0 %v548, 1
        %v565 = vpop.permute.xlu0 %564
        %566 = vrot.lane.b32.xlu0 %v549, 1
        %v567 = vpop.permute.xlu0 %566
        %568 = vrot.lane.b32.xlu0 %v550, 1
        %v569 = vpop.permute.xlu0 %568
        %570 = vrot.lane.b32.xlu0 %v551, 1
        %v571 = vpop.permute.xlu0 %570
        %572 = vrot.lane.b32.xlu0 %v552, 1
        %v573 = vpop.permute.xlu0 %572
        %574 = vrot.lane.b32.xlu0 %v553, 1
        %v575 = vpop.permute.xlu0 %574
        %576 = vrot.lane.b32.xlu0 %v554, 1
        %v577 = vpop.permute.xlu0 %576
        %578 = vrot.lane.b32.xlu0 %v555, 1
        %v579 = vpop.permute.xlu0 %578
        %v588 = vadd.f32 %v540, %v565
        %v589 = vadd.f32 %v541, %v567
        %v590 = vadd.f32 %v542, %v569
        %v591 = vadd.f32 %v543, %v571
        %v592 = vadd.f32 %v544, %v573
        %v593 = vadd.f32 %v545, %v575
        %v594 = vadd.f32 %v546, %v577
        %v595 = vadd.f32 %v547, %v579
        %v596 = vmul.f32 %v532, 0.36954647
        %v597 = vmul.f32 %v533, 0.36954647
        %v598 = vmul.f32 %v534, 0.36954647
        %v599 = vmul.f32 %v535, 0.36954647
        %v600 = vmul.f32 %v536, 0.36954647
        %v601 = vmul.f32 %v537, 0.36954647
        %v602 = vmul.f32 %v538, 0.36954647
        %v603 = vmul.f32 %v539, 0.36954647
        %v604 = vadd.f32 %v588, %v596
        %v605 = vadd.f32 %v589, %v597
        %v606 = vadd.f32 %v590, %v598
        %v607 = vadd.f32 %v591, %v599
        %v608 = vadd.f32 %v592, %v600
        %v609 = vadd.f32 %v593, %v601
        %v610 = vadd.f32 %v594, %v602
        %v611 = vadd.f32 %v595, %v603
        %612 = vrot.lane.b32.xlu0 %v548, 127
        %v613 = vpop.permute.xlu0 %612
        %614 = vrot.lane.b32.xlu0 %v549, 127
        %v615 = vpop.permute.xlu0 %614
        %616 = vrot.lane.b32.xlu0 %v550, 127
        %v617 = vpop.permute.xlu0 %616
        %618 = vrot.lane.b32.xlu0 %v551, 127
        %v619 = vpop.permute.xlu0 %618
        %620 = vrot.lane.b32.xlu0 %v552, 127
        %v621 = vpop.permute.xlu0 %620
        %622 = vrot.lane.b32.xlu0 %v553, 127
        %v623 = vpop.permute.xlu0 %622
        %624 = vrot.lane.b32.xlu0 %v554, 127
        %v625 = vpop.permute.xlu0 %624
        %626 = vrot.lane.b32.xlu0 %v555, 127
        %v627 = vpop.permute.xlu0 %626
        %v636 = vadd.f32 %v604, %v613
        %v637 = vadd.f32 %v605, %v615
        %v638 = vadd.f32 %v606, %v617
        %v639 = vadd.f32 %v607, %v619
        %v640 = vadd.f32 %v608, %v621
        %v641 = vadd.f32 %v609, %v623
        %v642 = vadd.f32 %v610, %v625
        %v643 = vadd.f32 %v611, %v627
        %652 = vrot.lane.b32.xlu0 %v540, 126
        %v653 = vpop.permute.xlu0 %652
        %654 = vrot.lane.b32.xlu0 %v541, 126
        %v655 = vpop.permute.xlu0 %654
        %656 = vrot.lane.b32.xlu0 %v542, 126
        %v657 = vpop.permute.xlu0 %656
        %658 = vrot.lane.b32.xlu0 %v543, 126
        %v659 = vpop.permute.xlu0 %658
        %660 = vrot.lane.b32.xlu0 %v544, 126
        %v661 = vpop.permute.xlu0 %660
        %662 = vrot.lane.b32.xlu0 %v545, 126
        %v663 = vpop.permute.xlu0 %662
        %664 = vrot.lane.b32.xlu0 %v546, 126
        %v665 = vpop.permute.xlu0 %664
        %666 = vrot.lane.b32.xlu0 %v547, 126
        %v667 = vpop.permute.xlu0 %666
        %v676 = vadd.f32 %v636, %v653
        %v677 = vadd.f32 %v637, %v655
        %v678 = vadd.f32 %v638, %v657
        %v679 = vadd.f32 %v639, %v659
        %v680 = vadd.f32 %v640, %v661
        %v681 = vadd.f32 %v641, %v663
        %v682 = vadd.f32 %v642, %v665
        %v683 = vadd.f32 %v643, %v667
        %vm684 = vcmask 15368
        %685 = vst.msk [vmem:[#allocation2] sm:$0xff] %vm684, %v676
        %686 = vst.msk [vmem:[#allocation2 + $0x8] sm:$0xff] %vm684, %v677
        %687 = vst.msk [vmem:[#allocation2 + $0x10] sm:$0xff] %vm684, %v678
        %688 = vst.msk [vmem:[#allocation2 + $0x18] sm:$0xff] %vm684, %v679
        %689 = vst.msk [vmem:[#allocation2 + $0x20] sm:$0xff] %vm684, %v680
        %690 = vst.msk [vmem:[#allocation2 + $0x28] sm:$0xff] %vm684, %v681
        %691 = vst.msk [vmem:[#allocation2 + $0x30] sm:$0xff] %vm684, %v682
        %692 = vst.msk [vmem:[#allocation2 + $0x38] sm:$0xff] %vm684, %v683
        %v693 = vld [vmem:[%s117] sm:$0xff]
        %v694 = vld [vmem:[%s117 + $0x8] sm:$0xff]
        %v695 = vld [vmem:[%s117 + $0x10] sm:$0xff]
        %v696 = vld [vmem:[%s117 + $0x18] sm:$0xff]
        %v697 = vld [vmem:[%s117 + $0x20] sm:$0xff]
        %v698 = vld [vmem:[%s117 + $0x28] sm:$0xff]
        %v699 = vld [vmem:[%s117 + $0x30] sm:$0xff]
        %v700 = vld [vmem:[%s117 + $0x38] sm:$0xff]
        %v701 = vmul.f32 %v693, 0.070766374
        %v702 = vmul.f32 %v694, 0.070766374
        %v703 = vmul.f32 %v695, 0.070766374
        %v704 = vmul.f32 %v696, 0.070766374
        %v705 = vmul.f32 %v697, 0.070766374
        %v706 = vmul.f32 %v698, 0.070766374
        %v707 = vmul.f32 %v699, 0.070766374
        %v708 = vmul.f32 %v700, 0.070766374
        %v709 = vmul.f32 %v693, 0.2444604
        %v710 = vmul.f32 %v694, 0.2444604
        %v711 = vmul.f32 %v695, 0.2444604
        %v712 = vmul.f32 %v696, 0.2444604
        %v713 = vmul.f32 %v697, 0.2444604
        %v714 = vmul.f32 %v698, 0.2444604
        %v715 = vmul.f32 %v699, 0.2444604
        %v716 = vmul.f32 %v700, 0.2444604
        %725 = vrot.lane.b32.xlu0 %v709, 127
        %v726 = vpop.permute.xlu0 %725
        %727 = vrot.lane.b32.xlu0 %v710, 127
        %v728 = vpop.permute.xlu0 %727
        %729 = vrot.lane.b32.xlu0 %v711, 127
        %v730 = vpop.permute.xlu0 %729
        %731 = vrot.lane.b32.xlu0 %v712, 127
        %v732 = vpop.permute.xlu0 %731
        %733 = vrot.lane.b32.xlu0 %v713, 127
        %v734 = vpop.permute.xlu0 %733
        %735 = vrot.lane.b32.xlu0 %v714, 127
        %v736 = vpop.permute.xlu0 %735
        %737 = vrot.lane.b32.xlu0 %v715, 127
        %v738 = vpop.permute.xlu0 %737
        %739 = vrot.lane.b32.xlu0 %v716, 127
        %v740 = vpop.permute.xlu0 %739
        %v749 = vadd.f32 %v701, %v726
        %v750 = vadd.f32 %v702, %v728
        %v751 = vadd.f32 %v703, %v730
        %v752 = vadd.f32 %v704, %v732
        %v753 = vadd.f32 %v705, %v734
        %v754 = vadd.f32 %v706, %v736
        %v755 = vadd.f32 %v707, %v738
        %v756 = vadd.f32 %v708, %v740
        %v757 = vmul.f32 %v693, 0.36954647
        %v758 = vmul.f32 %v694, 0.36954647
        %v759 = vmul.f32 %v695, 0.36954647
        %v760 = vmul.f32 %v696, 0.36954647
        %v761 = vmul.f32 %v697, 0.36954647
        %v762 = vmul.f32 %v698, 0.36954647
        %v763 = vmul.f32 %v699, 0.36954647
        %v764 = vmul.f32 %v700, 0.36954647
        %773 = vrot.lane.b32.xlu0 %v757, 126
        %v774 = vpop.permute.xlu0 %773
        %775 = vrot.lane.b32.xlu0 %v758, 126
        %v776 = vpop.permute.xlu0 %775
        %777 = vrot.lane.b32.xlu0 %v759, 126
        %v778 = vpop.permute.xlu0 %777
        %779 = vrot.lane.b32.xlu0 %v760, 126
        %v780 = vpop.permute.xlu0 %779
        %781 = vrot.lane.b32.xlu0 %v761, 126
        %v782 = vpop.permute.xlu0 %781
        %783 = vrot.lane.b32.xlu0 %v762, 126
        %v784 = vpop.permute.xlu0 %783
        %785 = vrot.lane.b32.xlu0 %v763, 126
        %v786 = vpop.permute.xlu0 %785
        %787 = vrot.lane.b32.xlu0 %v764, 126
        %v788 = vpop.permute.xlu0 %787
        %v797 = vadd.f32 %v749, %v774
        %v798 = vadd.f32 %v750, %v776
        %v799 = vadd.f32 %v751, %v778
        %v800 = vadd.f32 %v752, %v780
        %v801 = vadd.f32 %v753, %v782
        %v802 = vadd.f32 %v754, %v784
        %v803 = vadd.f32 %v755, %v786
        %v804 = vadd.f32 %v756, %v788
        %805 = vrot.lane.b32.xlu0 %v709, 125
        %v806 = vpop.permute.xlu0 %805
        %807 = vrot.lane.b32.xlu0 %v710, 125
        %v808 = vpop.permute.xlu0 %807
        %809 = vrot.lane.b32.xlu0 %v711, 125
        %v810 = vpop.permute.xlu0 %809
        %811 = vrot.lane.b32.xlu0 %v712, 125
        %v812 = vpop.permute.xlu0 %811
        %813 = vrot.lane.b32.xlu0 %v713, 125
        %v814 = vpop.permute.xlu0 %813
        %815 = vrot.lane.b32.xlu0 %v714, 125
        %v816 = vpop.permute.xlu0 %815
        %817 = vrot.lane.b32.xlu0 %v715, 125
        %v818 = vpop.permute.xlu0 %817
        %819 = vrot.lane.b32.xlu0 %v716, 125
        %v820 = vpop.permute.xlu0 %819
        %v829 = vadd.f32 %v797, %v806
        %v830 = vadd.f32 %v798, %v808
        %v831 = vadd.f32 %v799, %v810
        %v832 = vadd.f32 %v800, %v812
        %v833 = vadd.f32 %v801, %v814
        %v834 = vadd.f32 %v802, %v816
        %v835 = vadd.f32 %v803, %v818
        %v836 = vadd.f32 %v804, %v820
        %845 = vrot.lane.b32.xlu0 %v701, 126
        %v846 = vpop.permute.xlu0 %845
        %847 = vrot.lane.b32.xlu0 %v702, 126
        %v848 = vpop.permute.xlu0 %847
        %849 = vrot.lane.b32.xlu0 %v703, 126
        %v850 = vpop.permute.xlu0 %849
        %851 = vrot.lane.b32.xlu0 %v704, 126
        %v852 = vpop.permute.xlu0 %851
        %853 = vrot.lane.b32.xlu0 %v705, 126
        %v854 = vpop.permute.xlu0 %853
        %855 = vrot.lane.b32.xlu0 %v706, 126
        %v856 = vpop.permute.xlu0 %855
        %857 = vrot.lane.b32.xlu0 %v707, 126
        %v858 = vpop.permute.xlu0 %857
        %859 = vrot.lane.b32.xlu0 %v708, 126
        %v860 = vpop.permute.xlu0 %859
        %v869 = vadd.f32 %v829, %v846
        %v870 = vadd.f32 %v830, %v848
        %v871 = vadd.f32 %v831, %v850
        %v872 = vadd.f32 %v832, %v852
        %v873 = vadd.f32 %v833, %v854
        %v874 = vadd.f32 %v834, %v856
        %v875 = vadd.f32 %v835, %v858
        %v876 = vadd.f32 %v836, %v860
        %885 = vrot.lane.b32.xlu0 %v869, 2
        %v886 = vpop.permute.xlu0 %885
        %887 = vrot.lane.b32.xlu0 %v870, 2
        %v888 = vpop.permute.xlu0 %887
        %889 = vrot.lane.b32.xlu0 %v871, 2
        %v890 = vpop.permute.xlu0 %889
        %891 = vrot.lane.b32.xlu0 %v872, 2
        %v892 = vpop.permute.xlu0 %891
        %893 = vrot.lane.b32.xlu0 %v873, 2
        %v894 = vpop.permute.xlu0 %893
        %895 = vrot.lane.b32.xlu0 %v874, 2
        %v896 = vpop.permute.xlu0 %895
        %897 = vrot.lane.b32.xlu0 %v875, 2
        %v898 = vpop.permute.xlu0 %897
        %899 = vrot.lane.b32.xlu0 %v876, 2
        %v900 = vpop.permute.xlu0 %899
        %vm909 = vcmask 121968
        %910 = vst.msk [vmem:[#allocation2] sm:$0xff] %vm909, %v886
        %911 = vst.msk [vmem:[#allocation2 + $0x8] sm:$0xff] %vm909, %v888
        %912 = vst.msk [vmem:[#allocation2 + $0x10] sm:$0xff] %vm909, %v890
        %913 = vst.msk [vmem:[#allocation2 + $0x18] sm:$0xff] %vm909, %v892
        %914 = vst.msk [vmem:[#allocation2 + $0x20] sm:$0xff] %vm909, %v894
        %915 = vst.msk [vmem:[#allocation2 + $0x28] sm:$0xff] %vm909, %v896
        %916 = vst.msk [vmem:[#allocation2 + $0x30] sm:$0xff] %vm909, %v898
        %917 = vst.msk [vmem:[#allocation2 + $0x38] sm:$0xff] %vm909, %v900
        %v918 = vld [vmem:[%s117] sm:$0xff]
        %v919 = vld [vmem:[%s117 + $0x8] sm:$0xff]
        %v920 = vld [vmem:[%s117 + $0x10] sm:$0xff]
        %v921 = vld [vmem:[%s117 + $0x18] sm:$0xff]
        %v922 = vld [vmem:[%s117 + $0x20] sm:$0xff]
        %v923 = vld [vmem:[%s117 + $0x28] sm:$0xff]
        %v924 = vld [vmem:[%s117 + $0x30] sm:$0xff]
        %v925 = vld [vmem:[%s117 + $0x38] sm:$0xff]
        %v926 = vmul.f32 %v918, 0.070766374
        %v927 = vmul.f32 %v919, 0.070766374
        %v928 = vmul.f32 %v920, 0.070766374
        %v929 = vmul.f32 %v921, 0.070766374
        %v930 = vmul.f32 %v922, 0.070766374
        %v931 = vmul.f32 %v923, 0.070766374
        %v932 = vmul.f32 %v924, 0.070766374
        %v933 = vmul.f32 %v925, 0.070766374
        %v934 = vmul.f32 %v918, 0.2444604
        %v935 = vmul.f32 %v919, 0.2444604
        %v936 = vmul.f32 %v920, 0.2444604
        %v937 = vmul.f32 %v921, 0.2444604
        %v938 = vmul.f32 %v922, 0.2444604
        %v939 = vmul.f32 %v923, 0.2444604
        %v940 = vmul.f32 %v924, 0.2444604
        %v941 = vmul.f32 %v925, 0.2444604
        %950 = vrot.lane.b32.xlu0 %v934, 127
        %v951 = vpop.permute.xlu0 %950
        %952 = vrot.lane.b32.xlu0 %v935, 127
        %v953 = vpop.permute.xlu0 %952
        %954 = vrot.lane.b32.xlu0 %v936, 127
        %v955 = vpop.permute.xlu0 %954
        %956 = vrot.lane.b32.xlu0 %v937, 127
        %v957 = vpop.permute.xlu0 %956
        %958 = vrot.lane.b32.xlu0 %v938, 127
        %v959 = vpop.permute.xlu0 %958
        %960 = vrot.lane.b32.xlu0 %v939, 127
        %v961 = vpop.permute.xlu0 %960
        %962 = vrot.lane.b32.xlu0 %v940, 127
        %v963 = vpop.permute.xlu0 %962
        %964 = vrot.lane.b32.xlu0 %v941, 127
        %v965 = vpop.permute.xlu0 %964
        %v974 = vadd.f32 %v926, %v951
        %v975 = vadd.f32 %v927, %v953
        %v976 = vadd.f32 %v928, %v955
        %v977 = vadd.f32 %v929, %v957
        %v978 = vadd.f32 %v930, %v959
        %v979 = vadd.f32 %v931, %v961
        %v980 = vadd.f32 %v932, %v963
        %v981 = vadd.f32 %v933, %v965
        %v982 = vmul.f32 %v918, 0.36954647
        %v983 = vmul.f32 %v919, 0.36954647
        %v984 = vmul.f32 %v920, 0.36954647
        %v985 = vmul.f32 %v921, 0.36954647
        %v986 = vmul.f32 %v922, 0.36954647
        %v987 = vmul.f32 %v923, 0.36954647
        %v988 = vmul.f32 %v924, 0.36954647
        %v989 = vmul.f32 %v925, 0.36954647
        %998 = vrot.lane.b32.xlu0 %v982, 126
        %v999 = vpop.permute.xlu0 %998
        %1000 = vrot.lane.b32.xlu0 %v983, 126
        %v1001 = vpop.permute.xlu0 %1000
        %1002 = vrot.lane.b32.xlu0 %v984, 126
        %v1003 = vpop.permute.xlu0 %1002
        %1004 = vrot.lane.b32.xlu0 %v985, 126
        %v1005 = vpop.permute.xlu0 %1004
        %1006 = vrot.lane.b32.xlu0 %v986, 126
        %v1007 = vpop.permute.xlu0 %1006
        %1008 = vrot.lane.b32.xlu0 %v987, 126
        %v1009 = vpop.permute.xlu0 %1008
        %1010 = vrot.lane.b32.xlu0 %v988, 126
        %v1011 = vpop.permute.xlu0 %1010
        %1012 = vrot.lane.b32.xlu0 %v989, 126
        %v1013 = vpop.permute.xlu0 %1012
        %v1022 = vadd.f32 %v974, %v999
        %v1023 = vadd.f32 %v975, %v1001
        %v1024 = vadd.f32 %v976, %v1003
        %v1025 = vadd.f32 %v977, %v1005
        %v1026 = vadd.f32 %v978, %v1007
        %v1027 = vadd.f32 %v979, %v1009
        %v1028 = vadd.f32 %v980, %v1011
        %v1029 = vadd.f32 %v981, %v1013
        %v1030 = vadd.f32 %v1022, %v951
        %v1031 = vadd.f32 %v1023, %v953
        %v1032 = vadd.f32 %v1024, %v955
        %v1033 = vadd.f32 %v1025, %v957
        %v1034 = vadd.f32 %v1026, %v959
        %v1035 = vadd.f32 %v1027, %v961
        %v1036 = vadd.f32 %v1028, %v963
        %v1037 = vadd.f32 %v1029, %v965
        %v1038 = vadd.f32 %v1030, %v926
        %v1039 = vadd.f32 %v1031, %v927
        %v1040 = vadd.f32 %v1032, %v928
        %v1041 = vadd.f32 %v1033, %v929
        %v1042 = vadd.f32 %v1034, %v930
        %v1043 = vadd.f32 %v1035, %v931
        %v1044 = vadd.f32 %v1036, %v932
        %v1045 = vadd.f32 %v1037, %v933
        %1054 = vrot.lane.b32.xlu0 %v1038, 2
        %v1055 = vpop.permute.xlu0 %1054
        %1056 = vrot.lane.b32.xlu0 %v1039, 2
        %v1057 = vpop.permute.xlu0 %1056
        %1058 = vrot.lane.b32.xlu0 %v1040, 2
        %v1059 = vpop.permute.xlu0 %1058
        %1060 = vrot.lane.b32.xlu0 %v1041, 2
        %v1061 = vpop.permute.xlu0 %1060
        %1062 = vrot.lane.b32.xlu0 %v1042, 2
        %v1063 = vpop.permute.xlu0 %1062
        %1064 = vrot.lane.b32.xlu0 %v1043, 2
        %v1065 = vpop.permute.xlu0 %1064
        %1066 = vrot.lane.b32.xlu0 %v1044, 2
        %v1067 = vpop.permute.xlu0 %1066
        %1068 = vrot.lane.b32.xlu0 %v1045, 2
        %v1069 = vpop.permute.xlu0 %1068
        %vm1078 = vcmask 130168
        %1079 = vst.msk [vmem:[#allocation2] sm:$0xff] %vm1078, %v1055
        %1080 = vst.msk [vmem:[#allocation2 + $0x8] sm:$0xff] %vm1078, %v1057
        %1081 = vst.msk [vmem:[#allocation2 + $0x10] sm:$0xff] %vm1078, %v1059
        %1082 = vst.msk [vmem:[#allocation2 + $0x18] sm:$0xff] %vm1078, %v1061
        %1083 = vst.msk [vmem:[#allocation2 + $0x20] sm:$0xff] %vm1078, %v1063
        %1084 = vst.msk [vmem:[#allocation2 + $0x28] sm:$0xff] %vm1078, %v1065
        %1085 = vst.msk [vmem:[#allocation2 + $0x30] sm:$0xff] %vm1078, %v1067
        %1086 = vst.msk [vmem:[#allocation2 + $0x38] sm:$0xff] %vm1078, %v1069
        %v1087 = vld [vmem:[%s117] sm:$0x1]
        %v1088 = vld [vmem:[%s117 + $0x10] sm:$0x1]
        %v1089 = vld [vmem:[%s117 + $0x20] sm:$0x1]
        %v1090 = vld [vmem:[%s117 + $0x30] sm:$0x1]
        %v1091 = vmul.f32 %v1087, 2.0
        %v1092 = vmul.f32 %v1088, 2.0
        %v1093 = vmul.f32 %v1089, 2.0
        %v1094 = vmul.f32 %v1090, 2.0
        %v1095 = vld [vmem:[#allocation2 + $0x2] sm:$0x1]
        %v1096 = vld [vmem:[#allocation2 + $0x12] sm:$0x1]
        %v1097 = vld [vmem:[#allocation2 + $0x22] sm:$0x1]
        %v1098 = vld [vmem:[#allocation2 + $0x32] sm:$0x1]
        %v1099 = vmul.f32 %v1095, 0.070766374
        %v1100 = vmul.f32 %v1096, 0.070766374
        %v1101 = vmul.f32 %v1097, 0.070766374
        %v1102 = vmul.f32 %v1098, 0.070766374
        %v1103 = vsub.f32 %v1091, %v1099
        %v1104 = vsub.f32 %v1092, %v1100
        %v1105 = vsub.f32 %v1093, %v1101
        %v1106 = vsub.f32 %v1094, %v1102
        %v1107 = vld [vmem:[#allocation2 + $0x1] sm:$0x1]
        %v1108 = vld [vmem:[#allocation2 + $0x11] sm:$0x1]
        %v1109 = vld [vmem:[#allocation2 + $0x21] sm:$0x1]
        %v1110 = vld [vmem:[#allocation2 + $0x31] sm:$0x1]
        %v1111 = vmul.f32 %v1107, 0.2444604
        %v1112 = vmul.f32 %v1108, 0.2444604
        %v1113 = vmul.f32 %v1109, 0.2444604
        %v1114 = vmul.f32 %v1110, 0.2444604
        %v1115 = vsub.f32 %v1103, %v1111
        %v1116 = vsub.f32 %v1104, %v1112
        %v1117 = vsub.f32 %v1105, %v1113
        %v1118 = vsub.f32 %v1106, %v1114
        %v1119 = vld [vmem:[#allocation2] sm:$0x1]
        %v1120 = vld [vmem:[#allocation2 + $0x10] sm:$0x1]
        %v1121 = vld [vmem:[#allocation2 + $0x20] sm:$0x1]
        %v1122 = vld [vmem:[#allocation2 + $0x30] sm:$0x1]
        %v1123 = vmul.f32 %v1119, 0.36954647
        %v1124 = vmul.f32 %v1120, 0.36954647
        %v1125 = vmul.f32 %v1121, 0.36954647
        %v1126 = vmul.f32 %v1122, 0.36954647
        %v1127 = vsub.f32 %v1115, %v1123
        %v1128 = vsub.f32 %v1116, %v1124
        %v1129 = vsub.f32 %v1117, %v1125
        %v1130 = vsub.f32 %v1118, %v1126
        %v1131 = vsub.f32 %v1127, %v1111
        %v1132 = vsub.f32 %v1128, %v1112
        %v1133 = vsub.f32 %v1129, %v1113
        %v1134 = vsub.f32 %v1130, %v1114
        %v1135 = vsub.f32 %v1131, %v1099
        %v1136 = vsub.f32 %v1132, %v1100
        %v1137 = vsub.f32 %v1133, %v1101
        %v1138 = vsub.f32 %v1134, %v1102
        %v1139 = vmax.f32 %v1135, 0.0
        %v1140 = vmax.f32 %v1136, 0.0
        %v1141 = vmax.f32 %v1137, 0.0
        %v1142 = vmax.f32 %v1138, 0.0
        %v1143 = vmin.f32 %v1139, 1.0
        %v1144 = vmin.f32 %v1140, 1.0
        %v1145 = vmin.f32 %v1141, 1.0
        %v1146 = vmin.f32 %v1142, 1.0
        %vm1147 = vcmask 122880
        %1148 = vst.msk [vmem:[%s135] sm:$0x1] %vm1147, %v1143
        %1149 = vst.msk [vmem:[%s135 + $0x10] sm:$0x1] %vm1147, %v1144
        %1150 = vst.msk [vmem:[%s135 + $0x20] sm:$0x1] %vm1147, %v1145
        %1151 = vst.msk [vmem:[%s135 + $0x30] sm:$0x1] %vm1147, %v1146
        %v1152 = vld [vmem:[%s117 + $0x1] sm:$0x1]
        %v1153 = vld [vmem:[%s117 + $0x11] sm:$0x1]
        %v1154 = vld [vmem:[%s117 + $0x21] sm:$0x1]
        %v1155 = vld [vmem:[%s117 + $0x31] sm:$0x1]
        %v1156 = vmul.f32 %v1152, 2.0
        %v1157 = vmul.f32 %v1153, 2.0
        %v1158 = vmul.f32 %v1154, 2.0
        %v1159 = vmul.f32 %v1155, 2.0
        %v1160 = vld [vmem:[#allocation2 + $0x1] sm:$0x1]
        %v1161 = vld [vmem:[#allocation2 + $0x11] sm:$0x1]
        %v1162 = vld [vmem:[#allocation2 + $0x21] sm:$0x1]
        %v1163 = vld [vmem:[#allocation2 + $0x31] sm:$0x1]
        %v1164 = vmul.f32 %v1160, 0.070766374
        %v1165 = vmul.f32 %v1161, 0.070766374
        %v1166 = vmul.f32 %v1162, 0.070766374
        %v1167 = vmul.f32 %v1163, 0.070766374
        %v1168 = vsub.f32 %v1156, %v1164
        %v1169 = vsub.f32 %v1157, %v1165
        %v1170 = vsub.f32 %v1158, %v1166
        %v1171 = vsub.f32 %v1159, %v1167
        %v1172 = vld [vmem:[#allocation2] sm:$0x1]
        %v1173 = vld [vmem:[#allocation2 + $0x10] sm:$0x1]
        %v1174 = vld [vmem:[#allocation2 + $0x20] sm:$0x1]
        %v1175 = vld [vmem:[#allocation2 + $0x30] sm:$0x1]
        %v1176 = vmul.f32 %v1172, 0.2444604
        %v1177 = vmul.f32 %v1173, 0.2444604
        %v1178 = vmul.f32 %v1174, 0.2444604
        %v1179 = vmul.f32 %v1175, 0.2444604
        %v1180 = vsub.f32 %v1168, %v1176
        %v1181 = vsub.f32 %v1169, %v1177
        %v1182 = vsub.f32 %v1170, %v1178
        %v1183 = vsub.f32 %v1171, %v1179
        %v1184 = vmul.f32 %v1160, 0.36954647
        %v1185 = vmul.f32 %v1161, 0.36954647
        %v1186 = vmul.f32 %v1162, 0.36954647
        %v1187 = vmul.f32 %v1163, 0.36954647
        %v1188 = vsub.f32 %v1180, %v1184
        %v1189 = vsub.f32 %v1181, %v1185
        %v1190 = vsub.f32 %v1182, %v1186
        %v1191 = vsub.f32 %v1183, %v1187
        %v1192 = vld [vmem:[#allocation2 + $0x2] sm:$0x1]
        %v1193 = vld [vmem:[#allocation2 + $0x12] sm:$0x1]
        %v1194 = vld [vmem:[#allocation2 + $0x22] sm:$0x1]
        %v1195 = vld [vmem:[#allocation2 + $0x32] sm:$0x1]
        %v1196 = vmul.f32 %v1192, 0.2444604
        %v1197 = vmul.f32 %v1193, 0.2444604
        %v1198 = vmul.f32 %v1194, 0.2444604
        %v1199 = vmul.f32 %v1195, 0.2444604
        %v1200 = vsub.f32 %v1188, %v1196
        %v1201 = vsub.f32 %v1189, %v1197
        %v1202 = vsub.f32 %v1190, %v1198
        %v1203 = vsub.f32 %v1191, %v1199
        %v1204 = vld [vmem:[#allocation2 + $0x3] sm:$0x1]
        %v1205 = vld [vmem:[#allocation2 + $0x13] sm:$0x1]
        %v1206 = vld [vmem:[#allocation2 + $0x23] sm:$0x1]
        %v1207 = vld [vmem:[#allocation2 + $0x33] sm:$0x1]
        %v1208 = vmul.f32 %v1204, 0.070766374
        %v1209 = vmul.f32 %v1205, 0.070766374
        %v1210 = vmul.f32 %v1206, 0.070766374
        %v1211 = vmul.f32 %v1207, 0.070766374
        %v1212 = vsub.f32 %v1200, %v1208
        %v1213 = vsub.f32 %v1201, %v1209
        %v1214 = vsub.f32 %v1202, %v1210
        %v1215 = vsub.f32 %v1203, %v1211
        %v1216 = vmax.f32 %v1212, 0.0
        %v1217 = vmax.f32 %v1213, 0.0
        %v1218 = vmax.f32 %v1214, 0.0
        %v1219 = vmax.f32 %v1215, 0.0
        %v1220 = vmin.f32 %v1216, 1.0
        %v1221 = vmin.f32 %v1217, 1.0
        %v1222 = vmin.f32 %v1218, 1.0
        %v1223 = vmin.f32 %v1219, 1.0
        %1224 = vst.msk [vmem:[%s135 + $0x1] sm:$0x1] %vm1147, %v1220
        %1225 = vst.msk [vmem:[%s135 + $0x11] sm:$0x1] %vm1147, %v1221
        %1226 = vst.msk [vmem:[%s135 + $0x21] sm:$0x1] %vm1147, %v1222
        %1227 = vst.msk [vmem:[%s135 + $0x31] sm:$0x1] %vm1147, %v1223
        %v1228 = vld [vmem:[%s117 + $0xe] sm:$0x1]
        %v1229 = vld [vmem:[%s117 + $0x1e] sm:$0x1]
        %v1230 = vld [vmem:[%s117 + $0x2e] sm:$0x1]
        %v1231 = vld [vmem:[%s117 + $0x3e] sm:$0x1]
        %v1232 = vmul.f32 %v1228, 2.0
        %v1233 = vmul.f32 %v1229, 2.0
        %v1234 = vmul.f32 %v1230, 2.0
        %v1235 = vmul.f32 %v1231, 2.0
        %v1236 = vld [vmem:[#allocation2 + $0xc] sm:$0x1]
        %v1237 = vld [vmem:[#allocation2 + $0x1c] sm:$0x1]
        %v1238 = vld [vmem:[#allocation2 + $0x2c] sm:$0x1]
        %v1239 = vld [vmem:[#allocation2 + $0x3c] sm:$0x1]
        %v1240 = vmul.f32 %v1236, 0.070766374
        %v1241 = vmul.f32 %v1237, 0.070766374
        %v1242 = vmul.f32 %v1238, 0.070766374
        %v1243 = vmul.f32 %v1239, 0.070766374
        %v1244 = vsub.f32 %v1232, %v1240
        %v1245 = vsub.f32 %v1233, %v1241
        %v1246 = vsub.f32 %v1234, %v1242
        %v1247 = vsub.f32 %v1235, %v1243
        %v1248 = vld [vmem:[#allocation2 + $0xd] sm:$0x1]
        %v1249 = vld [vmem:[#allocation2 + $0x1d] sm:$0x1]
        %v1250 = vld [vmem:[#allocation2 + $0x2d] sm:$0x1]
        %v1251 = vld [vmem:[#allocation2 + $0x3d] sm:$0x1]
        %v1252 = vmul.f32 %v1248, 0.2444604
        %v1253 = vmul.f32 %v1249, 0.2444604
        %v1254 = vmul.f32 %v1250, 0.2444604
        %v1255 = vmul.f32 %v1251, 0.2444604
        %v1256 = vsub.f32 %v1244, %v1252
        %v1257 = vsub.f32 %v1245, %v1253
        %v1258 = vsub.f32 %v1246, %v1254
        %v1259 = vsub.f32 %v1247, %v1255
        %v1260 = vld [vmem:[#allocation2 + $0xe] sm:$0x1]
        %v1261 = vld [vmem:[#allocation2 + $0x1e] sm:$0x1]
        %v1262 = vld [vmem:[#allocation2 + $0x2e] sm:$0x1]
        %v1263 = vld [vmem:[#allocation2 + $0x3e] sm:$0x1]
        %v1264 = vmul.f32 %v1260, 0.36954647
        %v1265 = vmul.f32 %v1261, 0.36954647
        %v1266 = vmul.f32 %v1262, 0.36954647
        %v1267 = vmul.f32 %v1263, 0.36954647
        %v1268 = vsub.f32 %v1256, %v1264
        %v1269 = vsub.f32 %v1257, %v1265
        %v1270 = vsub.f32 %v1258, %v1266
        %v1271 = vsub.f32 %v1259, %v1267
        %v1272 = vld [vmem:[#allocation2 + $0xf] sm:$0x1]
        %v1273 = vld [vmem:[#allocation2 + $0x1f] sm:$0x1]
        %v1274 = vld [vmem:[#allocation2 + $0x2f] sm:$0x1]
        %v1275 = vld [vmem:[#allocation2 + $0x3f] sm:$0x1]
        %v1276 = vmul.f32 %v1272, 0.2444604
        %v1277 = vmul.f32 %v1273, 0.2444604
        %v1278 = vmul.f32 %v1274, 0.2444604
        %v1279 = vmul.f32 %v1275, 0.2444604
        %v1280 = vsub.f32 %v1268, %v1276
        %v1281 = vsub.f32 %v1269, %v1277
        %v1282 = vsub.f32 %v1270, %v1278
        %v1283 = vsub.f32 %v1271, %v1279
        %v1284 = vmul.f32 %v1260, 0.070766374
        %v1285 = vmul.f32 %v1261, 0.070766374
        %v1286 = vmul.f32 %v1262, 0.070766374
        %v1287 = vmul.f32 %v1263, 0.070766374
        %v1288 = vsub.f32 %v1280, %v1284
        %v1289 = vsub.f32 %v1281, %v1285
        %v1290 = vsub.f32 %v1282, %v1286
        %v1291 = vsub.f32 %v1283, %v1287
        %v1292 = vmax.f32 %v1288, 0.0
        %v1293 = vmax.f32 %v1289, 0.0
        %v1294 = vmax.f32 %v1290, 0.0
        %v1295 = vmax.f32 %v1291, 0.0
        %v1296 = vmin.f32 %v1292, 1.0
        %v1297 = vmin.f32 %v1293, 1.0
        %v1298 = vmin.f32 %v1294, 1.0
        %v1299 = vmin.f32 %v1295, 1.0
        %1300 = vst.msk [vmem:[%s135 + $0xe] sm:$0x1] %vm1147, %v1296
        %1301 = vst.msk [vmem:[%s135 + $0x1e] sm:$0x1] %vm1147, %v1297
        %1302 = vst.msk [vmem:[%s135 + $0x2e] sm:$0x1] %vm1147, %v1298
        %1303 = vst.msk [vmem:[%s135 + $0x3e] sm:$0x1] %vm1147, %v1299
        %v1304 = vld [vmem:[%s117 + $0xf] sm:$0x1]
        %v1305 = vld [vmem:[%s117 + $0x1f] sm:$0x1]
        %v1306 = vld [vmem:[%s117 + $0x2f] sm:$0x1]
        %v1307 = vld [vmem:[%s117 + $0x3f] sm:$0x1]
        %v1308 = vmul.f32 %v1304, 2.0
        %v1309 = vmul.f32 %v1305, 2.0
        %v1310 = vmul.f32 %v1306, 2.0
        %v1311 = vmul.f32 %v1307, 2.0
        %v1312 = vld [vmem:[#allocation2 + $0xd] sm:$0x1]
        %v1313 = vld [vmem:[#allocation2 + $0x1d] sm:$0x1]
        %v1314 = vld [vmem:[#allocation2 + $0x2d] sm:$0x1]
        %v1315 = vld [vmem:[#allocation2 + $0x3d] sm:$0x1]
        %v1316 = vmul.f32 %v1312, 0.070766374
        %v1317 = vmul.f32 %v1313, 0.070766374
        %v1318 = vmul.f32 %v1314, 0.070766374
        %v1319 = vmul.f32 %v1315, 0.070766374
        %v1320 = vsub.f32 %v1308, %v1316
        %v1321 = vsub.f32 %v1309, %v1317
        %v1322 = vsub.f32 %v1310, %v1318
        %v1323 = vsub.f32 %v1311, %v1319
        %v1324 = vld [vmem:[#allocation2 + $0xe] sm:$0x1]
        %v1325 = vld [vmem:[#allocation2 + $0x1e] sm:$0x1]
        %v1326 = vld [vmem:[#allocation2 + $0x2e] sm:$0x1]
        %v1327 = vld [vmem:[#allocation2 + $0x3e] sm:$0x1]
        %v1328 = vmul.f32 %v1324, 0.2444604
        %v1329 = vmul.f32 %v1325, 0.2444604
        %v1330 = vmul.f32 %v1326, 0.2444604
        %v1331 = vmul.f32 %v1327, 0.2444604
        %v1332 = vsub.f32 %v1320, %v1328
        %v1333 = vsub.f32 %v1321, %v1329
        %v1334 = vsub.f32 %v1322, %v1330
        %v1335 = vsub.f32 %v1323, %v1331
        %v1336 = vld [vmem:[#allocation2 + $0xf] sm:$0x1]
        %v1337 = vld [vmem:[#allocation2 + $0x1f] sm:$0x1]
        %v1338 = vld [vmem:[#allocation2 + $0x2f] sm:$0x1]
        %v1339 = vld [vmem:[#allocation2 + $0x3f] sm:$0x1]
        %v1340 = vmul.f32 %v1336, 0.36954647
        %v1341 = vmul.f32 %v1337, 0.36954647
        %v1342 = vmul.f32 %v1338, 0.36954647
        %v1343 = vmul.f32 %v1339, 0.36954647
        %v1344 = vsub.f32 %v1332, %v1340
        %v1345 = vsub.f32 %v1333, %v1341
        %v1346 = vsub.f32 %v1334, %v1342
        %v1347 = vsub.f32 %v1335, %v1343
        %v1348 = vsub.f32 %v1344, %v1328
        %v1349 = vsub.f32 %v1345, %v1329
        %v1350 = vsub.f32 %v1346, %v1330
        %v1351 = vsub.f32 %v1347, %v1331
        %v1352 = vsub.f32 %v1348, %v1316
        %v1353 = vsub.f32 %v1349, %v1317
        %v1354 = vsub.f32 %v1350, %v1318
        %v1355 = vsub.f32 %v1351, %v1319
        %v1356 = vmax.f32 %v1352, 0.0
        %v1357 = vmax.f32 %v1353, 0.0
        %v1358 = vmax.f32 %v1354, 0.0
        %v1359 = vmax.f32 %v1355, 0.0
        %v1360 = vmin.f32 %v1356, 1.0
        %v1361 = vmin.f32 %v1357, 1.0
        %v1362 = vmin.f32 %v1358, 1.0
        %v1363 = vmin.f32 %v1359, 1.0
        %1364 = vst.msk [vmem:[%s135 + $0xf] sm:$0x1] %vm1147, %v1360
        %1365 = vst.msk [vmem:[%s135 + $0x1f] sm:$0x1] %vm1147, %v1361
        %1366 = vst.msk [vmem:[%s135 + $0x2f] sm:$0x1] %vm1147, %v1362
        %1367 = vst.msk [vmem:[%s135 + $0x3f] sm:$0x1] %vm1147, %v1363
        %v1368 = vld [vmem:[%s117 + $0x2] sm:$0xff]
        %v1369 = vld [vmem:[%s117 + $0xa] sm:$0xf]
        %v1370 = vld [vmem:[%s117 + $0x12] sm:$0xff]
        %v1371 = vld [vmem:[%s117 + $0x1a] sm:$0xf]
        %v1372 = vld [vmem:[%s117 + $0x22] sm:$0xff]
        %v1373 = vld [vmem:[%s117 + $0x2a] sm:$0xf]
        %v1374 = vld [vmem:[%s117 + $0x32] sm:$0xff]
        %v1375 = vld [vmem:[%s117 + $0x3a] sm:$0xf]
        %v1376 = vmul.f32 %v1368, 2.0
        %v1377 = vmul.f32 %v1369, 2.0
        %v1378 = vmul.f32 %v1370, 2.0
        %v1379 = vmul.f32 %v1371, 2.0
        %v1380 = vmul.f32 %v1372, 2.0
        %v1381 = vmul.f32 %v1373, 2.0
        %v1382 = vmul.f32 %v1374, 2.0
        %v1383 = vmul.f32 %v1375, 2.0
        %v1384 = vld [vmem:[#allocation2] sm:$0xff]
        %v1385 = vld [vmem:[#allocation2 + $0x8] sm:$0xf]
        %v1386 = vld [vmem:[#allocation2 + $0x10] sm:$0xff]
        %v1387 = vld [vmem:[#allocation2 + $0x18] sm:$0xf]
        %v1388 = vld [vmem:[#allocation2 + $0x20] sm:$0xff]
        %v1389 = vld [vmem:[#allocation2 + $0x28] sm:$0xf]
        %v1390 = vld [vmem:[#allocation2 + $0x30] sm:$0xff]
        %v1391 = vld [vmem:[#allocation2 + $0x38] sm:$0xf]
        %v1392 = vmul.f32 %v1384, 0.070766374
        %v1393 = vmul.f32 %v1385, 0.070766374
        %v1394 = vmul.f32 %v1386, 0.070766374
        %v1395 = vmul.f32 %v1387, 0.070766374
        %v1396 = vmul.f32 %v1388, 0.070766374
        %v1397 = vmul.f32 %v1389, 0.070766374
        %v1398 = vmul.f32 %v1390, 0.070766374
        %v1399 = vmul.f32 %v1391, 0.070766374
        %v1400 = vsub.f32 %v1376, %v1392
        %v1401 = vsub.f32 %v1377, %v1393
        %v1402 = vsub.f32 %v1378, %v1394
        %v1403 = vsub.f32 %v1379, %v1395
        %v1404 = vsub.f32 %v1380, %v1396
        %v1405 = vsub.f32 %v1381, %v1397
        %v1406 = vsub.f32 %v1382, %v1398
        %v1407 = vsub.f32 %v1383, %v1399
        %v1408 = vld [vmem:[#allocation2 + $0x1] sm:$0xff]
        %v1409 = vld [vmem:[#allocation2 + $0x9] sm:$0xf]
        %v1410 = vld [vmem:[#allocation2 + $0x11] sm:$0xff]
        %v1411 = vld [vmem:[#allocation2 + $0x19] sm:$0xf]
        %v1412 = vld [vmem:[#allocation2 + $0x21] sm:$0xff]
        %v1413 = vld [vmem:[#allocation2 + $0x29] sm:$0xf]
        %v1414 = vld [vmem:[#allocation2 + $0x31] sm:$0xff]
        %v1415 = vld [vmem:[#allocation2 + $0x39] sm:$0xf]
        %v1416 = vmul.f32 %v1408, 0.2444604
        %v1417 = vmul.f32 %v1409, 0.2444604
        %v1418 = vmul.f32 %v1410, 0.2444604
        %v1419 = vmul.f32 %v1411, 0.2444604
        %v1420 = vmul.f32 %v1412, 0.2444604
        %v1421 = vmul.f32 %v1413, 0.2444604
        %v1422 = vmul.f32 %v1414, 0.2444604
        %v1423 = vmul.f32 %v1415, 0.2444604
        %v1424 = vsub.f32 %v1400, %v1416
        %v1425 = vsub.f32 %v1401, %v1417
        %v1426 = vsub.f32 %v1402, %v1418
        %v1427 = vsub.f32 %v1403, %v1419
        %v1428 = vsub.f32 %v1404, %v1420
        %v1429 = vsub.f32 %v1405, %v1421
        %v1430 = vsub.f32 %v1406, %v1422
        %v1431 = vsub.f32 %v1407, %v1423
        %v1432 = vld [vmem:[#allocation2 + $0x2] sm:$0xff]
        %v1433 = vld [vmem:[#allocation2 + $0xa] sm:$0xf]
        %v1434 = vld [vmem:[#allocation2 + $0x12] sm:$0xff]
        %v1435 = vld [vmem:[#allocation2 + $0x1a] sm:$0xf]
        %v1436 = vld [vmem:[#allocation2 + $0x22] sm:$0xff]
        %v1437 = vld [vmem:[#allocation2 + $0x2a] sm:$0xf]
        %v1438 = vld [vmem:[#allocation2 + $0x32] sm:$0xff]
        %v1439 = vld [vmem:[#allocation2 + $0x3a] sm:$0xf]
        %v1440 = vmul.f32 %v1432, 0.36954647
        %v1441 = vmul.f32 %v1433, 0.36954647
        %v1442 = vmul.f32 %v1434, 0.36954647
        %v1443 = vmul.f32 %v1435, 0.36954647
        %v1444 = vmul.f32 %v1436, 0.36954647
        %v1445 = vmul.f32 %v1437, 0.36954647
        %v1446 = vmul.f32 %v1438, 0.36954647
        %v1447 = vmul.f32 %v1439, 0.36954647
        %v1448 = vsub.f32 %v1424, %v1440
        %v1449 = vsub.f32 %v1425, %v1441
        %v1450 = vsub.f32 %v1426, %v1442
        %v1451 = vsub.f32 %v1427, %v1443
        %v1452 = vsub.f32 %v1428, %v1444
        %v1453 = vsub.f32 %v1429, %v1445
        %v1454 = vsub.f32 %v1430, %v1446
        %v1455 = vsub.f32 %v1431, %v1447
        %v1456 = vld [vmem:[#allocation2 + $0x3] sm:$0xff]
        %v1457 = vld [vmem:[#allocation2 + $0xb] sm:$0xf]
        %v1458 = vld [vmem:[#allocation2 + $0x13] sm:$0xff]
        %v1459 = vld [vmem:[#allocation2 + $0x1b] sm:$0xf]
        %v1460 = vld [vmem:[#allocation2 + $0x23] sm:$0xff]
        %v1461 = vld [vmem:[#allocation2 + $0x2b] sm:$0xf]
        %v1462 = vld [vmem:[#allocation2 + $0x33] sm:$0xff]
        %v1463 = vld [vmem:[#allocation2 + $0x3b] sm:$0xf]
        %v1464 = vmul.f32 %v1456, 0.2444604
        %v1465 = vmul.f32 %v1457, 0.2444604
        %v1466 = vmul.f32 %v1458, 0.2444604
        %v1467 = vmul.f32 %v1459, 0.2444604
        %v1468 = vmul.f32 %v1460, 0.2444604
        %v1469 = vmul.f32 %v1461, 0.2444604
        %v1470 = vmul.f32 %v1462, 0.2444604
        %v1471 = vmul.f32 %v1463, 0.2444604
        %v1472 = vsub.f32 %v1448, %v1464
        %v1473 = vsub.f32 %v1449, %v1465
        %v1474 = vsub.f32 %v1450, %v1466
        %v1475 = vsub.f32 %v1451, %v1467
        %v1476 = vsub.f32 %v1452, %v1468
        %v1477 = vsub.f32 %v1453, %v1469
        %v1478 = vsub.f32 %v1454, %v1470
        %v1479 = vsub.f32 %v1455, %v1471
        %v1480 = vld [vmem:[#allocation2 + $0x4] sm:$0xff]
        %v1481 = vld [vmem:[#allocation2 + $0xc] sm:$0xf]
        %v1482 = vld [vmem:[#allocation2 + $0x14] sm:$0xff]
        %v1483 = vld [vmem:[#allocation2 + $0x1c] sm:$0xf]
        %v1484 = vld [vmem:[#allocation2 + $0x24] sm:$0xff]
        %v1485 = vld [vmem:[#allocation2 + $0x2c] sm:$0xf]
        %v1486 = vld [vmem:[#allocation2 + $0x34] sm:$0xff]
        %v1487 = vld [vmem:[#allocation2 + $0x3c] sm:$0xf]
        %v1488 = vmul.f32 %v1480, 0.070766374
        %v1489 = vmul.f32 %v1481, 0.070766374
        %v1490 = vmul.f32 %v1482, 0.070766374
        %v1491 = vmul.f32 %v1483, 0.070766374
        %v1492 = vmul.f32 %v1484, 0.070766374
        %v1493 = vmul.f32 %v1485, 0.070766374
        %v1494 = vmul.f32 %v1486, 0.070766374
        %v1495 = vmul.f32 %v1487, 0.070766374
        %v1496 = vsub.f32 %v1472, %v1488
        %v1497 = vsub.f32 %v1473, %v1489
        %v1498 = vsub.f32 %v1474, %v1490
        %v1499 = vsub.f32 %v1475, %v1491
        %v1500 = vsub.f32 %v1476, %v1492
        %v1501 = vsub.f32 %v1477, %v1493
        %v1502 = vsub.f32 %v1478, %v1494
        %v1503 = vsub.f32 %v1479, %v1495
        %v1504 = vmax.f32 %v1496, 0.0
        %v1505 = vmax.f32 %v1497, 0.0
        %v1506 = vmax.f32 %v1498, 0.0
        %v1507 = vmax.f32 %v1499, 0.0
        %v1508 = vmax.f32 %v1500, 0.0
        %v1509 = vmax.f32 %v1501, 0.0
        %v1510 = vmax.f32 %v1502, 0.0
        %v1511 = vmax.f32 %v1503, 0.0
        %v1512 = vmin.f32 %v1504, 1.0
        %v1513 = vmin.f32 %v1505, 1.0
        %v1514 = vmin.f32 %v1506, 1.0
        %v1515 = vmin.f32 %v1507, 1.0
        %v1516 = vmin.f32 %v1508, 1.0
        %v1517 = vmin.f32 %v1509, 1.0
        %v1518 = vmin.f32 %v1510, 1.0
        %v1519 = vmin.f32 %v1511, 1.0
        %vm1520 = vcmask 130048
        %1521 = vst.msk [vmem:[%s135 + $0x2] sm:$0xff] %vm1520, %v1512
        %vm1522 = vcmask 125952
        %1523 = vst.msk [vmem:[%s135 + $0xa] sm:$0xf] %vm1522, %v1513
        %1524 = vst.msk [vmem:[%s135 + $0x12] sm:$0xff] %vm1520, %v1514
        %1525 = vst.msk [vmem:[%s135 + $0x1a] sm:$0xf] %vm1522, %v1515
        %1526 = vst.msk [vmem:[%s135 + $0x22] sm:$0xff] %vm1520, %v1516
        %1527 = vst.msk [vmem:[%s135 + $0x2a] sm:$0xf] %vm1522, %v1517
        %1528 = vst.msk [vmem:[%s135 + $0x32] sm:$0xff] %vm1520, %v1518
        %1529 = vst.msk [vmem:[%s135 + $0x3a] sm:$0xf] %vm1522, %v1519
        %s1530 = sand.u32 %s52, 1
        %s1531 = scalar_lea.sflag [#allocation5], %s1530
        %s1532 = sand.u32 %s52, 1
        %s1533 = smul.addr %s1532, 64
        %s1534 = scalar_lea.vmem [#allocation6], %s1533
        // Predicated region
        $region29: #{tpu_custom_call.1} parent=23 // pred_check
          %p1535 = pneg %p62
        $region30: #{tpu_custom_call.1} parent=23 // pred_check_branch
          %1537 = sbr.rel (%p1535) target = $region32
        $region31: #{tpu_custom_call.1} parent=23 // pred_region
          %s1538 = smul.u32 4, %s18
          %s1540 = ssub.s32 1024, 1024
          %1541 = vsyncadd %s1531, %s1540
          %s1542 = smul.addr %s1538, 2
          %s1543 = smul.addr %s1542, 128
          %s1544 = scalar_lea.hbm %s1, %s1543
          %s1545 = sshll.u32 %s1534, 4
          %s1546 = int_to_ptr.vmem [resolvable:$true] %s1545
          %1551 = dma.vmem_to_hbm [thread:$0]  %s1546, 1024, %s1544, %s1531, 128, 128, 8
        $region32: #{tpu_custom_call.1} parent=23 // pred_fallthru
          _
      $region24: #{tpu_custom_call.1} parent=5 // pred_fallthru
        _
      %p1552 = scmp.le.s32.totalorder 2, %s13
      // Predicated region
      $region33: #{tpu_custom_call.1} parent=5 // pred_check
        %p1553 = pneg %p1552
      $region34: #{tpu_custom_call.1} parent=5 // pred_check_branch
        %1555 = sbr.rel (%p1553) target = $region36
      $region35: #{tpu_custom_call.1} parent=5 // pred_region
        %s1556 = ssub.s32 %s13, 2
        // Predicated region
        $region37: #{tpu_custom_call.1} parent=35 // pred_check
          %p1557 = pneg %p68
        $region38: #{tpu_custom_call.1} parent=35 // pred_check_branch
          %1559 = sbr.rel (%p1557) target = $region40
        $region39: #{tpu_custom_call.1} parent=35 // pred_region
          %s1560 = sand.u32 %s53, 1
          %s1561 = scalar_lea.sflag [#allocation5], %s1560
          %s1562 = sand.u32 %s53, 1
          %s1563 = smul.addr %s1562, 64
          %s1564 = scalar_lea.vmem [#allocation6], %s1563
          %1565 = dma.done %s1561, 1024
        $region40: #{tpu_custom_call.1} parent=35 // pred_fallthru
          _
      $region36: #{tpu_custom_call.1} parent=5 // pred_fallthru
        _
    $region6: #{tpu_custom_call.1} parent=1 // loop_footer
      %s17 = sadd.s32 1, %s13
    $region7: #{tpu_custom_call.1} parent=1 // loop_footer_branch
      %12 = sbr.rel target = $region3
    $region8: #{tpu_custom_call.1} parent=1 // loop_exit
      _
    %1566 = vsyncpa [#allocation4], 1
    %s1567 = scalar_lea.sflag [#allocation4], 1
    %1568 = vsyncpa %s1567, 1
    %1569 = vsyncpa [#allocation5], 1
    %s1570 = scalar_lea.sflag [#allocation5], 1
    %1571 = vsyncpa %s1570, 1

</llo_original>
